<compile_context>
chip_gen: v7x
topology: tpu7x:2x2x1
jax: 0.10.0
libtpu: 0.0.40
codegen_flags: <defaults>
</compile_context>

<pallas_src>
import numpy as np
import jax
import jax.numpy as jnp
from jax import lax
from jax.experimental import pallas as pl
from jax.experimental.pallas import tpu as pltpu

N_QUBITS = 8


# --------------------------------------------------------------------------- #
# Kernel
# --------------------------------------------------------------------------- #
def _circuit_expectations(xs, w_eff, b_eff):
    """<Z_0..7> of the RX/CNOT-ring circuit for each row of xs: (R, E) -> (R, 8)."""
    phi = jnp.dot(xs, w_eff, preferred_element_type=jnp.float32,
                  precision=lax.Precision.HIGHEST) + b_eff          # (R, 8)
    c = jnp.cos(phi)                                                 # (R, 8)

    # Per-qubit columns (static single-lane slices; exact f32, no constants).
    cols = [c[:, k:k + 1] for k in range(N_QUBITS)]                  # (R, 1) each

    # q[k] = prod_{j=1..k} cos(phi_j)
    q = [None] * N_QUBITS
    acc = cols[1]
    q[1] = acc
    for k in range(2, N_QUBITS):
        acc = acc * cols[k]
        q[k] = acc

    # z_0 = q[7];  z_k = cos(phi_0) * q[k]  for k >= 1
    zcols = [q[N_QUBITS - 1]] + [cols[0] * q[k] for k in range(1, N_QUBITS)]

    lane = lax.broadcasted_iota(jnp.int32, c.shape, 1)
    z = jnp.zeros_like(c)
    for k in range(N_QUBITS):
        z = jnp.where(lane == k, zcols[k], z)                        # (R, 8)
    return z


def _ffq_kernel(x_ref, w_eff_ref, b_eff_ref, w_out_t_ref, b_out_ref, o_ref):
    """Row-parallel body: (R, E) -> (R, Eout); one row per (batch, timestep)."""
    z = _circuit_expectations(x_ref[...], w_eff_ref[...], b_eff_ref[...])
    out = jnp.dot(z, w_out_t_ref[...], preferred_element_type=jnp.float32,
                  precision=lax.Precision.HIGHEST) + b_out_ref[...]
    o_ref[...] = out.astype(o_ref.dtype)


# --------------------------------------------------------------------------- #
# Wrapper / tiling policy
# --------------------------------------------------------------------------- #
def _round_up(x, m):
    return (x + m - 1) // m * m


def _vmem_budget_bytes():
    """Generation-aware VMEM budget (conservative fallback sized for v7x)."""
    try:
        cap = int(pltpu.get_tpu_info().vmem_capacity_bytes)
    except Exception:
        cap = 64 * 1024 * 1024
    return max(16 * 1024 * 1024, min(cap * 3 // 4, 96 * 1024 * 1024))


def _block_rows(E, Eout, budget, max_rows=8192):
    """Largest multiple-of-8 row tile whose double-buffered in/out blocks fit."""
    # lane-padded weights (W_eff pads its 8 lanes to 128) + headroom for scratch
    weights = 2 * 4 * (E * 128 + 16 * Eout + 8 * 128)
    avail = budget - weights - (4 << 20)
    per_row = 2 * 4 * (E + Eout)            # in + out, double buffered, f32
    cap = max(8, avail // per_row)
    cap = int(cap) - int(cap) % 8
    return max(8, min(cap, max_rows))


def prepare_params(params):
    """Fold encoder wiring + trainable RX angles into linear_in (inference-time).

    A[j, k] = contribution of h_j to the RX angle on wire k: identity except
    wire 2 also receives input 3 and wire 3 receives no encoded input.
    (For training, do this fold inside the traced loss so theta gradients flow.)
    """
    A = np.eye(N_QUBITS, dtype=np.float32)
    A[3, 2] = 1.0
    A[3, 3] = 0.0
    A = jnp.asarray(A)
    w_eff = params["w_in"].T.astype(jnp.float32) @ A                        # (E, 8)
    b_eff = (params["b_in"] @ A + params["theta"]).astype(jnp.float32)
    b_eff = b_eff.reshape(1, N_QUBITS)                                      # (1, 8)
    w_out_t = params["w_out"].T.astype(jnp.float32)                         # (8, E)
    b_out = params["b_out"].astype(jnp.float32).reshape(1, -1)              # (1, E)
    return w_eff, b_eff, w_out_t, b_out


def feed_forward_quantum(x, prepped, *, block_rows=None):
    """x: (B, S, E) -> (B, S, E), matching FeedForwardQuantum.forward."""
    B, S, E = x.shape
    w_eff, b_eff, w_out_t, b_out = prepped
    x = x.astype(jnp.float32)

    M = B * S
    Eout = _round_up(E, 128)                       # lane-dense output stores
    if Eout != E:
        w_out_t = jnp.pad(w_out_t, ((0, 0), (0, Eout - E)))
        b_out = jnp.pad(b_out, ((0, 0), (0, Eout - E)))

    budget = _vmem_budget_bytes()
    tm = block_rows if block_rows is not None else _block_rows(E, Eout, budget)
    tm = min(int(tm), M)
    if tm < M:
        tm = max(8, tm - tm % 8)                   # (8, .) sublane alignment

    xf = x.reshape(M, E)                           # free: rows = (batch, timestep)
    out = pl.pallas_call(
        _ffq_kernel,
        out_shape=jax.ShapeDtypeStruct((M, Eout), jnp.float32),
        grid=(pl.cdiv(M, tm),),
        in_specs=[
            pl.BlockSpec((tm, E), lambda i: (i, 0)),            # activation rows
            pl.BlockSpec((E, N_QUBITS), lambda i: (0, 0)),      # W_eff
            pl.BlockSpec((1, N_QUBITS), lambda i: (0, 0)),      # b_eff
            pl.BlockSpec((N_QUBITS, Eout), lambda i: (0, 0)),   # W_out^T (padded)
            pl.BlockSpec((1, Eout), lambda i: (0, 0)),          # b_out   (padded)
        ],
        out_specs=pl.BlockSpec((tm, Eout), lambda i: (i, 0)),
        compiler_params=pltpu.CompilerParams(
            dimension_semantics=("parallel",),
            vmem_limit_bytes=int(budget)),
    )(xf, w_eff, b_eff, w_out_t, b_out)

    return out[:, :E].reshape(B, S, E)


# --------------------------------------------------------------------------- #
# Reference + synthetic params
# --------------------------------------------------------------------------- #
def init_params(key, embed_dim, n_qubits=N_QUBITS):
    # nn.Linear-style init (U(-1/sqrt(fan_in), ..)) and RX angles U(0, 2*pi).
    k1, k2, k3, k4, k5 = jax.random.split(key, 5)
    lim_in = 1.0 / jnp.sqrt(jnp.float32(embed_dim))
    lim_out = 1.0 / jnp.sqrt(jnp.float32(n_qubits))
    return {
        "w_in": jax.random.uniform(k1, (n_qubits, embed_dim), jnp.float32, -lim_in, lim_in),
        "b_in": jax.random.uniform(k2, (n_qubits,), jnp.float32, -lim_in, lim_in),
        "theta": jax.random.uniform(k3, (n_qubits,), jnp.float32, 0.0, 2.0 * jnp.pi),
        "w_out": jax.random.uniform(k4, (embed_dim, n_qubits), jnp.float32, -lim_out, lim_out),
        "b_out": jax.random.uniform(k5, (embed_dim,), jnp.float32, -lim_out, lim_out),
    }


def reference(x, params):
    """Pure-JAX reference of the same closed-form forward (output (B, S, E))."""
    h = jnp.einsum("bse,qe->bsq", x, params["w_in"], precision="highest") + params["b_in"]
    th = params["theta"]
    phi = jnp.stack(
        [
            h[..., 0] + th[0],
            h[..., 1] + th[1],
            h[..., 2] + h[..., 3] + th[2],
            jnp.broadcast_to(th[3], h[..., 3].shape),
            h[..., 4] + th[4],
            h[..., 5] + th[5],
            h[..., 6] + th[6],
            h[..., 7] + th[7],
        ],
        axis=-1,
    )
    c = jnp.cos(phi)
    cp = jnp.cumprod(c, axis=-1)
    z0 = jnp.prod(c[..., 1:], axis=-1, keepdims=True)
    z = jnp.concatenate([z0, cp[..., 1:]], axis=-1)
    out = jnp.einsum("bsq,eq->bse", z, params["w_out"], precision="highest") + params["b_out"]
    return out


if __name__ == "__main__":
    key = jax.random.PRNGKey(0)
    kx1, kx2, kp1, kp2 = jax.random.split(key, 4)
    fwd = jax.jit(feed_forward_quantum, static_argnames=("block_rows",))

    # Case 1: lane-aligned embed dim, single block.
    B, S, E = 2, 8, 128
    x = jax.random.normal(kx1, (B, S, E), jnp.float32)
    params = init_params(kp1, E)
    prepped = prepare_params(params)
    out = fwd(x, prepped)
    jax.block_until_ready(out)
    assert out.shape == (B, S, E), out.shape
    ref = reference(x, params)
    assert jnp.allclose(out, ref, atol=2e-2, rtol=2e-2), float(jnp.max(jnp.abs(out - ref)))

    # Case 2: unaligned embed dim (lane-padded output) + multi-block grid with a
    # partial last block (B*S = 21 rows, block_rows = 8).
    B2, S2, E2 = 3, 7, 32
    x2 = jax.random.normal(kx2, (B2, S2, E2), jnp.float32)
    params2 = init_params(kp2, E2)
    prepped2 = prepare_params(params2)
    out2 = fwd(x2, prepped2, block_rows=8)
    jax.block_until_ready(out2)
    assert out2.shape == (B2, S2, E2), out2.shape
    ref2 = reference(x2, params2)
    assert jnp.allclose(out2, ref2, atol=2e-2, rtol=2e-2), float(jnp.max(jnp.abs(out2 - ref2)))

    print("KERNEL_OK")
</pallas_src>

<mosaic_0001>
module attributes {stable_mosaic.version = 11 : i64} {
  func.func @_ffq_kernel(%arg0: i32, %arg1: memref<16x128xf32, #tpu.memory_space<vmem>>, %arg2: memref<128x8xf32, #tpu.memory_space<vmem>>, %arg3: memref<1x8xf32, #tpu.memory_space<vmem>>, %arg4: memref<8x128xf32, #tpu.memory_space<vmem>>, %arg5: memref<1x128xf32, #tpu.memory_space<vmem>>, %arg6: memref<16x128xf32, #tpu.memory_space<vmem>>) attributes {dimension_semantics = [#tpu.dimension_semantics<parallel>], iteration_bounds = array<i64: 1>, scalar_prefetch = 0 : i64, scratch_operands = 0 : i64, tpu.core_type = #tpu.core_type<tc>, window_params = [{transform_indices = @transform_0, window_bounds = array<i64: 16, 128>}, {pipeline_mode = #tpu.pipeline_mode<synchronous>, transform_indices = @transform_1, window_bounds = array<i64: 128, 8>}, {pipeline_mode = #tpu.pipeline_mode<synchronous>, transform_indices = @transform_2, window_bounds = array<i64: 1, 8>}, {pipeline_mode = #tpu.pipeline_mode<synchronous>, transform_indices = @transform_3, window_bounds = array<i64: 8, 128>}, {pipeline_mode = #tpu.pipeline_mode<synchronous>, transform_indices = @transform_4, window_bounds = array<i64: 1, 128>}, {transform_indices = @transform_5, window_bounds = array<i64: 16, 128>}]} {
    %c0 = arith.constant 0 : index
    %c0_0 = arith.constant 0 : index
    %0 = vector.load %arg1[%c0, %c0_0] : memref<16x128xf32, #tpu.memory_space<vmem>>, vector<16x128xf32>
    %c0_1 = arith.constant 0 : index
    %c0_2 = arith.constant 0 : index
    %1 = vector.load %arg2[%c0_1, %c0_2] : memref<128x8xf32, #tpu.memory_space<vmem>>, vector<128x8xf32>
    %c0_3 = arith.constant 0 : index
    %c0_4 = arith.constant 0 : index
    %2 = vector.load %arg3[%c0_3, %c0_4] : memref<1x8xf32, #tpu.memory_space<vmem>>, vector<1x8xf32>
    %cst = arith.constant dense<0.000000e+00> : vector<16x8xf32>
    %3 = tpu.matmul %0, %1, %cst {dimension_numbers = #tpu.dot_dimension_numbers<[1], [0], [0], [1], [0, 0, 1, 1], [], []>, precision = #tpu.contract_precision<fp32>} : vector<16x128xf32>, vector<128x8xf32>, vector<16x8xf32> -> vector<16x8xf32>
    %4 = vector.broadcast %2 : vector<1x8xf32> to vector<16x8xf32>
    %5 = arith.addf %3, %4 : vector<16x8xf32>
    %6 = math.cos %5 : vector<16x8xf32>
    %7 = vector.extract_strided_slice %6 {offsets = [0, 0], sizes = [16, 1], strides = [1, 1]} : vector<16x8xf32> to vector<16x1xf32>
    %8 = vector.extract_strided_slice %6 {offsets = [0, 1], sizes = [16, 1], strides = [1, 1]} : vector<16x8xf32> to vector<16x1xf32>
    %9 = vector.extract_strided_slice %6 {offsets = [0, 2], sizes = [16, 1], strides = [1, 1]} : vector<16x8xf32> to vector<16x1xf32>
    %10 = vector.extract_strided_slice %6 {offsets = [0, 3], sizes = [16, 1], strides = [1, 1]} : vector<16x8xf32> to vector<16x1xf32>
    %11 = vector.extract_strided_slice %6 {offsets = [0, 4], sizes = [16, 1], strides = [1, 1]} : vector<16x8xf32> to vector<16x1xf32>
    %12 = vector.extract_strided_slice %6 {offsets = [0, 5], sizes = [16, 1], strides = [1, 1]} : vector<16x8xf32> to vector<16x1xf32>
    %13 = vector.extract_strided_slice %6 {offsets = [0, 6], sizes = [16, 1], strides = [1, 1]} : vector<16x8xf32> to vector<16x1xf32>
    %14 = vector.extract_strided_slice %6 {offsets = [0, 7], sizes = [16, 1], strides = [1, 1]} : vector<16x8xf32> to vector<16x1xf32>
    %15 = arith.mulf %8, %9 : vector<16x1xf32>
    %16 = arith.mulf %15, %10 : vector<16x1xf32>
    %17 = arith.mulf %16, %11 : vector<16x1xf32>
    %18 = arith.mulf %17, %12 : vector<16x1xf32>
    %19 = arith.mulf %18, %13 : vector<16x1xf32>
    %20 = arith.mulf %19, %14 : vector<16x1xf32>
    %21 = arith.mulf %7, %8 : vector<16x1xf32>
    %22 = arith.mulf %7, %15 : vector<16x1xf32>
    %23 = arith.mulf %7, %16 : vector<16x1xf32>
    %24 = arith.mulf %7, %17 : vector<16x1xf32>
    %25 = arith.mulf %7, %18 : vector<16x1xf32>
    %26 = arith.mulf %7, %19 : vector<16x1xf32>
    %27 = arith.mulf %7, %20 : vector<16x1xf32>
    %28 = tpu.iota {dimensions = array<i32: 1>} : vector<16x8xi32>
    %cst_5 = arith.constant 0.000000e+00 : f32
    %29 = vector.broadcast %cst_5 : f32 to vector<16x8xf32>
    %c0_i32 = arith.constant 0 : i32
    %30 = vector.broadcast %c0_i32 : i32 to vector<16x8xi32>
    %31 = arith.cmpi eq, %28, %30 : vector<16x8xi32>
    %32 = vector.shape_cast %20 : vector<16x1xf32> to vector<16x1xf32>
    %33 = vector.broadcast %32 : vector<16x1xf32> to vector<16x8xf32>
    %34 = arith.select %31, %33, %29 : vector<16x8xi1>, vector<16x8xf32>
    %c1_i32 = arith.constant 1 : i32
    %35 = vector.broadcast %c1_i32 : i32 to vector<16x8xi32>
    %36 = arith.cmpi eq, %28, %35 : vector<16x8xi32>
    %37 = vector.shape_cast %21 : vector<16x1xf32> to vector<16x1xf32>
    %38 = vector.broadcast %37 : vector<16x1xf32> to vector<16x8xf32>
    %39 = arith.select %36, %38, %34 : vector<16x8xi1>, vector<16x8xf32>
    %c2_i32 = arith.constant 2 : i32
    %40 = vector.broadcast %c2_i32 : i32 to vector<16x8xi32>
    %41 = arith.cmpi eq, %28, %40 : vector<16x8xi32>
    %42 = vector.shape_cast %22 : vector<16x1xf32> to vector<16x1xf32>
    %43 = vector.broadcast %42 : vector<16x1xf32> to vector<16x8xf32>
    %44 = arith.select %41, %43, %39 : vector<16x8xi1>, vector<16x8xf32>
    %c3_i32 = arith.constant 3 : i32
    %45 = vector.broadcast %c3_i32 : i32 to vector<16x8xi32>
    %46 = arith.cmpi eq, %28, %45 : vector<16x8xi32>
    %47 = vector.shape_cast %23 : vector<16x1xf32> to vector<16x1xf32>
    %48 = vector.broadcast %47 : vector<16x1xf32> to vector<16x8xf32>
    %49 = arith.select %46, %48, %44 : vector<16x8xi1>, vector<16x8xf32>
    %c4_i32 = arith.constant 4 : i32
    %50 = vector.broadcast %c4_i32 : i32 to vector<16x8xi32>
    %51 = arith.cmpi eq, %28, %50 : vector<16x8xi32>
    %52 = vector.shape_cast %24 : vector<16x1xf32> to vector<16x1xf32>
    %53 = vector.broadcast %52 : vector<16x1xf32> to vector<16x8xf32>
    %54 = arith.select %51, %53, %49 : vector<16x8xi1>, vector<16x8xf32>
    %c5_i32 = arith.constant 5 : i32
    %55 = vector.broadcast %c5_i32 : i32 to vector<16x8xi32>
    %56 = arith.cmpi eq, %28, %55 : vector<16x8xi32>
    %57 = vector.shape_cast %25 : vector<16x1xf32> to vector<16x1xf32>
    %58 = vector.broadcast %57 : vector<16x1xf32> to vector<16x8xf32>
    %59 = arith.select %56, %58, %54 : vector<16x8xi1>, vector<16x8xf32>
    %c6_i32 = arith.constant 6 : i32
    %60 = vector.broadcast %c6_i32 : i32 to vector<16x8xi32>
    %61 = arith.cmpi eq, %28, %60 : vector<16x8xi32>
    %62 = vector.shape_cast %26 : vector<16x1xf32> to vector<16x1xf32>
    %63 = vector.broadcast %62 : vector<16x1xf32> to vector<16x8xf32>
    %64 = arith.select %61, %63, %59 : vector<16x8xi1>, vector<16x8xf32>
    %c7_i32 = arith.constant 7 : i32
    %65 = vector.broadcast %c7_i32 : i32 to vector<16x8xi32>
    %66 = arith.cmpi eq, %28, %65 : vector<16x8xi32>
    %67 = vector.shape_cast %27 : vector<16x1xf32> to vector<16x1xf32>
    %68 = vector.broadcast %67 : vector<16x1xf32> to vector<16x8xf32>
    %69 = arith.select %66, %68, %64 : vector<16x8xi1>, vector<16x8xf32>
    %c0_6 = arith.constant 0 : index
    %c0_7 = arith.constant 0 : index
    %70 = vector.load %arg4[%c0_6, %c0_7] : memref<8x128xf32, #tpu.memory_space<vmem>>, vector<8x128xf32>
    %cst_8 = arith.constant dense<0.000000e+00> : vector<16x128xf32>
    %71 = tpu.matmul %69, %70, %cst_8 {dimension_numbers = #tpu.dot_dimension_numbers<[1], [0], [0], [1], [0, 0, 1, 1], [], []>, precision = #tpu.contract_precision<fp32>} : vector<16x8xf32>, vector<8x128xf32>, vector<16x128xf32> -> vector<16x128xf32>
    %c0_9 = arith.constant 0 : index
    %c0_10 = arith.constant 0 : index
    %72 = vector.load %arg5[%c0_9, %c0_10] : memref<1x128xf32, #tpu.memory_space<vmem>>, vector<1x128xf32>
    %73 = vector.broadcast %72 : vector<1x128xf32> to vector<16x128xf32>
    %74 = arith.addf %71, %73 : vector<16x128xf32>
    %c0_11 = arith.constant 0 : index
    %c0_12 = arith.constant 0 : index
    %75 = vector.load %arg6[%c0_11, %c0_12] : memref<16x128xf32, #tpu.memory_space<vmem>>, vector<16x128xf32>
    tpu.vector_store %arg6[%c0_11, %c0_12], %74 {strides = array<i32>} : memref<16x128xf32, #tpu.memory_space<vmem>>, vector<16x128xf32>,
    return
  }
  func.func @transform_0(%arg0: i32) -> (i32, i32) {
    %c0_i32 = arith.constant 0 : i32
    %c0_i32_0 = arith.constant 0 : i32
    return %arg0, %c0_i32 : i32, i32
  }
  func.func @transform_1(%arg0: i32) -> (i32, i32) {
    %c0_i32 = arith.constant 0 : i32
    %c0_i32_0 = arith.constant 0 : i32
    %c0_i32_1 = arith.constant 0 : i32
    return %c0_i32, %c0_i32_0 : i32, i32
  }
  func.func @transform_2(%arg0: i32) -> (i32, i32) {
    %c0_i32 = arith.constant 0 : i32
    %c0_i32_0 = arith.constant 0 : i32
    %c0_i32_1 = arith.constant 0 : i32
    return %c0_i32, %c0_i32_0 : i32, i32
  }
  func.func @transform_3(%arg0: i32) -> (i32, i32) {
    %c0_i32 = arith.constant 0 : i32
    %c0_i32_0 = arith.constant 0 : i32
    %c0_i32_1 = arith.constant 0 : i32
    return %c0_i32, %c0_i32_0 : i32, i32
  }
  func.func @transform_4(%arg0: i32) -> (i32, i32) {
    %c0_i32 = arith.constant 0 : i32
    %c0_i32_0 = arith.constant 0 : i32
    %c0_i32_1 = arith.constant 0 : i32
    return %c0_i32, %c0_i32_0 : i32, i32
  }
  func.func @transform_5(%arg0: i32) -> (i32, i32) {
    %c0_i32 = arith.constant 0 : i32
    %c0_i32_0 = arith.constant 0 : i32
    return %arg0, %c0_i32 : i32, i32
  }
}

</mosaic_0001>

<llo_original>
// kernel: feed_forward_quantum.1
$region0: #{feed_forward_quantum.1}
  #allocation0 [shape = 'u32[]', space=smem, size = 0x4, offset = 0x4, fixed_abs, tag = 'smem constant byte address 0x4 - core index']
  #allocation1 [shape = 'u32[144,128]{1,0:T(1,128)}', space=vmem, size = 0x12000, scoped, tag = 'internal scratch']
  %s0 = inlined_call_operand.vmem [shape: f32[16,128], index: 0, kind: input, shape index: {}]
  %s1 = inlined_call_operand.vmem [shape: f32[128,8], index: 1, kind: input, shape index: {}]
  %s2 = inlined_call_operand.vmem [shape: f32[1,8], index: 2, kind: input, shape index: {}]
  %s3 = inlined_call_operand.vmem [shape: f32[8,128], index: 3, kind: input, shape index: {}]
  %s4 = inlined_call_operand.vmem [shape: f32[1,128], index: 4, kind: input, shape index: {}]
  %s5 = inlined_call_operand.hbm [shape: f32[16,128], index: 5, kind: output, shape index: {}]
  %s6 = sld [smem:[#allocation0]]
  $region30: #{feed_forward_quantum.1} parent=0
    _
  %s8 = ssub.s32 1, %s6
  %s9 = scalar_select 0, %s8, %s6
  $region1: #{feed_forward_quantum.1} parent=0
    #allocation2 [shape = 'u8[8192]{0}', space=vmem, size = 0x2000, scoped, tag = 'output window, operand 0, single buffered']
    #allocation3 [shape = 's32[1]{0}', space=sflag, size = 0x4, scoped, tag = 'scoped memory for feed_forward_quantum.1']
    %10 = vsyncpa [#allocation3], 0
    // Predicated region
    $region2: #{feed_forward_quantum.1} parent=1 // pred_check
      _
    $region3: #{feed_forward_quantum.1} parent=1 // pred_check_branch
      %12 = sbr.rel (0) target = $region5
    $region4: #{feed_forward_quantum.1} parent=1 // pred_region
      _
    $region5: #{feed_forward_quantum.1} parent=1 // pred_fallthru
      _
    // Predicated region
    $region6: #{feed_forward_quantum.1} parent=1 // pred_check
      _
    $region7: #{feed_forward_quantum.1} parent=1 // pred_check_branch
      %14 = sbr.rel (0) target = $region9
    $region8: #{feed_forward_quantum.1} parent=1 // pred_region
      _
    $region9: #{feed_forward_quantum.1} parent=1 // pred_fallthru
      _
    // Predicated region
    $region10: #{feed_forward_quantum.1} parent=1 // pred_check
      _
    $region11: #{feed_forward_quantum.1} parent=1 // pred_check_branch
      %16 = sbr.rel (0) target = $region13
    $region12: #{feed_forward_quantum.1} parent=1 // pred_region
      _
    $region13: #{feed_forward_quantum.1} parent=1 // pred_fallthru
      _
    // Predicated region
    $region14: #{feed_forward_quantum.1} parent=1 // pred_check
      _
    $region15: #{feed_forward_quantum.1} parent=1 // pred_check_branch
      %18 = sbr.rel (0) target = $region17
    $region16: #{feed_forward_quantum.1} parent=1 // pred_region
      _
    $region17: #{feed_forward_quantum.1} parent=1 // pred_fallthru
      _
    // Predicated region
    $region18: #{feed_forward_quantum.1} parent=1 // pred_check
      _
    $region19: #{feed_forward_quantum.1} parent=1 // pred_check_branch
      %20 = sbr.rel (0) target = $region21
    $region20: #{feed_forward_quantum.1} parent=1 // pred_region
      _
    $region21: #{feed_forward_quantum.1} parent=1 // pred_fallthru
      _
    %v21 = vld [vmem:[%s0] sm:$0xff]
    %v22 = vld [vmem:[%s0 + $0x8] sm:$0xff]
    %v23 = vld [vmem:[%s1] sm:$0xff]
    %v24 = vld [vmem:[%s1 + $0x8] sm:$0xff]
    %v25 = vld [vmem:[%s1 + $0x10] sm:$0xff]
    %v26 = vld [vmem:[%s1 + $0x18] sm:$0xff]
    %v27 = vld [vmem:[%s1 + $0x20] sm:$0xff]
    %v28 = vld [vmem:[%s1 + $0x28] sm:$0xff]
    %v29 = vld [vmem:[%s1 + $0x30] sm:$0xff]
    %v30 = vld [vmem:[%s1 + $0x38] sm:$0xff]
    %v31 = vld [vmem:[%s1 + $0x40] sm:$0xff]
    %v32 = vld [vmem:[%s1 + $0x48] sm:$0xff]
    %v33 = vld [vmem:[%s1 + $0x50] sm:$0xff]
    %v34 = vld [vmem:[%s1 + $0x58] sm:$0xff]
    %v35 = vld [vmem:[%s1 + $0x60] sm:$0xff]
    %v36 = vld [vmem:[%s1 + $0x68] sm:$0xff]
    %v37 = vld [vmem:[%s1 + $0x70] sm:$0xff]
    %v38 = vld [vmem:[%s1 + $0x78] sm:$0xff]
    %v39 = vld [vmem:[%s2] sm:$0x1]
    %v41 = vlaneseq
    %v42 = vshrl.u32 %v41, 7
    %v43 = vsub.s32 0, %v42
    %v44 = vrot.slane %v39, %v43
    %46 = vmatprep.subr.mxu0 0.0
    %v47 = vand.u32 %v23, 4294901760
    %48 = vmatpush1.msra.mxu0 %v47
    %49 = vmatprep.subr.mxu0 0.0
    %v50 = vand.u32 %v24, 4294901760
    %51 = vmatpush1.msra.mxu0 %v50
    %52 = vmatprep.subr.mxu0 0.0
    %v53 = vand.u32 %v25, 4294901760
    %54 = vmatpush1.msra.mxu0 %v53
    %55 = vmatprep.subr.mxu0 0.0
    %v56 = vand.u32 %v26, 4294901760
    %57 = vmatpush1.msra.mxu0 %v56
    %58 = vmatprep.subr.mxu0 0.0
    %v59 = vand.u32 %v27, 4294901760
    %60 = vmatpush1.msra.mxu0 %v59
    %61 = vmatprep.subr.mxu0 0.0
    %v62 = vand.u32 %v28, 4294901760
    %63 = vmatpush1.msra.mxu0 %v62
    %64 = vmatprep.subr.mxu0 0.0
    %v65 = vand.u32 %v29, 4294901760
    %66 = vmatpush1.msra.mxu0 %v65
    %67 = vmatprep.subr.mxu0 0.0
    %v68 = vand.u32 %v30, 4294901760
    %69 = vmatpush1.msra.mxu0 %v68
    %70 = vmatprep.subr.mxu0 0.0
    %v71 = vand.u32 %v31, 4294901760
    %72 = vmatpush1.msra.mxu0 %v71
    %73 = vmatprep.subr.mxu0 0.0
    %v74 = vand.u32 %v32, 4294901760
    %75 = vmatpush1.msra.mxu0 %v74
    %76 = vmatprep.subr.mxu0 0.0
    %v77 = vand.u32 %v33, 4294901760
    %78 = vmatpush1.msra.mxu0 %v77
    %79 = vmatprep.subr.mxu0 0.0
    %v80 = vand.u32 %v34, 4294901760
    %81 = vmatpush1.msra.mxu0 %v80
    %82 = vmatprep.subr.mxu0 0.0
    %v83 = vand.u32 %v35, 4294901760
    %84 = vmatpush1.msra.mxu0 %v83
    %85 = vmatprep.subr.mxu0 0.0
    %v86 = vand.u32 %v36, 4294901760
    %87 = vmatpush1.msra.mxu0 %v86
    %88 = vmatprep.subr.mxu0 0.0
    %v89 = vand.u32 %v37, 4294901760
    %90 = vmatpush1.msra.mxu0 %v89
    %91 = vmatprep.subr.mxu0 0.0
    %v92 = vand.u32 %v38, 4294901760
    %93 = vmatpush1.msra.mxu0 %v92
    %94 = vmatprep.subr.mxu0 0.0
    %95 = vmatpush1.msra.mxu0 0.0
    %96 = vmatprep.subr.mxu0 0.0
    %97 = vmatpush1.msra.mxu0 0.0
    %98 = vmatprep.subr.mxu0 0.0
    %99 = vmatpush1.msra.mxu0 0.0
    %100 = vmatprep.subr.mxu0 0.0
    %101 = vmatpush1.msra.mxu0 0.0
    %102 = vmatprep.subr.mxu0 0.0
    %103 = vmatpush1.msra.mxu0 0.0
    %104 = vmatprep.subr.mxu0 0.0
    %105 = vmatpush1.msra.mxu0 0.0
    %106 = vmatprep.subr.mxu0 0.0
    %107 = vmatpush1.msra.mxu0 0.0
    %108 = vmatprep.subr.mxu0 0.0
    %109 = vmatpush1.msra.mxu0 0.0
    %110 = vmatprep.subr.mxu0 0.0
    %111 = vmatpush1.msra.mxu0 0.0
    %112 = vmatprep.subr.mxu0 0.0
    %113 = vmatpush1.msra.mxu0 0.0
    %114 = vmatprep.subr.mxu0 0.0
    %115 = vmatpush1.msra.mxu0 0.0
    %116 = vmatprep.subr.mxu0 0.0
    %117 = vmatpush1.msra.mxu0 0.0
    %118 = vmatprep.subr.mxu0 0.0
    %119 = vmatpush1.msra.mxu0 0.0
    %120 = vmatprep.subr.mxu0 0.0
    %121 = vmatpush1.msra.mxu0 0.0
    %122 = vmatprep.subr.mxu0 0.0
    %123 = vmatpush1.msra.mxu0 0.0
    %124 = vmatprep.subr.mxu0 0.0
    %125 = vmatpush1.msra.mxu0 0.0
    %126 = vmatprep.mubr.f32.mxu0 0.0
    %v127 = vand.u32 %v21, 4294901760
    %v128 = vsub.f32 %v21, %v127
    %v129 = vand.u32 %v128, 4294901760
    %v130 = vsub.f32 %v128, %v129
    %v131 = vand.u32 %v130, 4294901760
    %132 = vmatmul.mubr.f32.gmra.mrb[0].mxu0 %v131
    %v133 = vpop.f32.mrb[0].mxu0
    %v134 = vadd.f32 %v44, %v133
    %v135 = vpop.f32.mrb[0].mxu0
    %136 = vmatprep.mubr.f32.mxu0 0.0
    %v137 = vand.u32 %v22, 4294901760
    %v138 = vsub.f32 %v22, %v137
    %v139 = vand.u32 %v138, 4294901760
    %v140 = vsub.f32 %v138, %v139
    %v141 = vand.u32 %v140, 4294901760
    %142 = vmatmul.mubr.f32.gmra.mrb[0].mxu0 %v141
    %v143 = vpop.f32.mrb[0].mxu0
    %v144 = vadd.f32 %v44, %v143
    %v145 = vpop.f32.mrb[0].mxu0
    %146 = vdwg.mxu0
    %147 = vmatprep.subr.mxu0 0.0
    %v148 = vand.u32 %v23, 4294901760
    %v149 = vsub.f32 %v23, %v148
    %v150 = vand.u32 %v149, 4294901760
    %v151 = vsub.f32 %v149, %v150
    %v152 = vand.u32 %v151, 4294901760
    %153 = vmatpush1.msra.mxu0 %v152
    %154 = vmatprep.subr.mxu0 0.0
    %v155 = vand.u32 %v24, 4294901760
    %v156 = vsub.f32 %v24, %v155
    %v157 = vand.u32 %v156, 4294901760
    %v158 = vsub.f32 %v156, %v157
    %v159 = vand.u32 %v158, 4294901760
    %160 = vmatpush1.msra.mxu0 %v159
    %161 = vmatprep.subr.mxu0 0.0
    %v162 = vand.u32 %v25, 4294901760
    %v163 = vsub.f32 %v25, %v162
    %v164 = vand.u32 %v163, 4294901760
    %v165 = vsub.f32 %v163, %v164
    %v166 = vand.u32 %v165, 4294901760
    %167 = vmatpush1.msra.mxu0 %v166
    %168 = vmatprep.subr.mxu0 0.0
    %v169 = vand.u32 %v26, 4294901760
    %v170 = vsub.f32 %v26, %v169
    %v171 = vand.u32 %v170, 4294901760
    %v172 = vsub.f32 %v170, %v171
    %v173 = vand.u32 %v172, 4294901760
    %174 = vmatpush1.msra.mxu0 %v173
    %175 = vmatprep.subr.mxu0 0.0
    %v176 = vand.u32 %v27, 4294901760
    %v177 = vsub.f32 %v27, %v176
    %v178 = vand.u32 %v177, 4294901760
    %v179 = vsub.f32 %v177, %v178
    %v180 = vand.u32 %v179, 4294901760
    %181 = vmatpush1.msra.mxu0 %v180
    %182 = vmatprep.subr.mxu0 0.0
    %v183 = vand.u32 %v28, 4294901760
    %v184 = vsub.f32 %v28, %v183
    %v185 = vand.u32 %v184, 4294901760
    %v186 = vsub.f32 %v184, %v185
    %v187 = vand.u32 %v186, 4294901760
    %188 = vmatpush1.msra.mxu0 %v187
    %189 = vmatprep.subr.mxu0 0.0
    %v190 = vand.u32 %v29, 4294901760
    %v191 = vsub.f32 %v29, %v190
    %v192 = vand.u32 %v191, 4294901760
    %v193 = vsub.f32 %v191, %v192
    %v194 = vand.u32 %v193, 4294901760
    %195 = vmatpush1.msra.mxu0 %v194
    %196 = vmatprep.subr.mxu0 0.0
    %v197 = vand.u32 %v30, 4294901760
    %v198 = vsub.f32 %v30, %v197
    %v199 = vand.u32 %v198, 4294901760
    %v200 = vsub.f32 %v198, %v199
    %v201 = vand.u32 %v200, 4294901760
    %202 = vmatpush1.msra.mxu0 %v201
    %203 = vmatprep.subr.mxu0 0.0
    %v204 = vand.u32 %v31, 4294901760
    %v205 = vsub.f32 %v31, %v204
    %v206 = vand.u32 %v205, 4294901760
    %v207 = vsub.f32 %v205, %v206
    %v208 = vand.u32 %v207, 4294901760
    %209 = vmatpush1.msra.mxu0 %v208
    %210 = vmatprep.subr.mxu0 0.0
    %v211 = vand.u32 %v32, 4294901760
    %v212 = vsub.f32 %v32, %v211
    %v213 = vand.u32 %v212, 4294901760
    %v214 = vsub.f32 %v212, %v213
    %v215 = vand.u32 %v214, 4294901760
    %216 = vmatpush1.msra.mxu0 %v215
    %217 = vmatprep.subr.mxu0 0.0
    %v218 = vand.u32 %v33, 4294901760
    %v219 = vsub.f32 %v33, %v218
    %v220 = vand.u32 %v219, 4294901760
    %v221 = vsub.f32 %v219, %v220
    %v222 = vand.u32 %v221, 4294901760
    %223 = vmatpush1.msra.mxu0 %v222
    %224 = vmatprep.subr.mxu0 0.0
    %v225 = vand.u32 %v34, 4294901760
    %v226 = vsub.f32 %v34, %v225
    %v227 = vand.u32 %v226, 4294901760
    %v228 = vsub.f32 %v226, %v227
    %v229 = vand.u32 %v228, 4294901760
    %230 = vmatpush1.msra.mxu0 %v229
    %231 = vmatprep.subr.mxu0 0.0
    %v232 = vand.u32 %v35, 4294901760
    %v233 = vsub.f32 %v35, %v232
    %v234 = vand.u32 %v233, 4294901760
    %v235 = vsub.f32 %v233, %v234
    %v236 = vand.u32 %v235, 4294901760
    %237 = vmatpush1.msra.mxu0 %v236
    %238 = vmatprep.subr.mxu0 0.0
    %v239 = vand.u32 %v36, 4294901760
    %v240 = vsub.f32 %v36, %v239
    %v241 = vand.u32 %v240, 4294901760
    %v242 = vsub.f32 %v240, %v241
    %v243 = vand.u32 %v242, 4294901760
    %244 = vmatpush1.msra.mxu0 %v243
    %245 = vmatprep.subr.mxu0 0.0
    %v246 = vand.u32 %v37, 4294901760
    %v247 = vsub.f32 %v37, %v246
    %v248 = vand.u32 %v247, 4294901760
    %v249 = vsub.f32 %v247, %v248
    %v250 = vand.u32 %v249, 4294901760
    %251 = vmatpush1.msra.mxu0 %v250
    %252 = vmatprep.subr.mxu0 0.0
    %v253 = vand.u32 %v38, 4294901760
    %v254 = vsub.f32 %v38, %v253
    %v255 = vand.u32 %v254, 4294901760
    %v256 = vsub.f32 %v254, %v255
    %v257 = vand.u32 %v256, 4294901760
    %258 = vmatpush1.msra.mxu0 %v257
    %259 = vmatprep.subr.mxu0 0.0
    %260 = vmatpush1.msra.mxu0 0.0
    %261 = vmatprep.subr.mxu0 0.0
    %262 = vmatpush1.msra.mxu0 0.0
    %263 = vmatprep.subr.mxu0 0.0
    %264 = vmatpush1.msra.mxu0 0.0
    %265 = vmatprep.subr.mxu0 0.0
    %266 = vmatpush1.msra.mxu0 0.0
    %267 = vmatprep.subr.mxu0 0.0
    %268 = vmatpush1.msra.mxu0 0.0
    %269 = vmatprep.subr.mxu0 0.0
    %270 = vmatpush1.msra.mxu0 0.0
    %271 = vmatprep.subr.mxu0 0.0
    %272 = vmatpush1.msra.mxu0 0.0
    %273 = vmatprep.subr.mxu0 0.0
    %274 = vmatpush1.msra.mxu0 0.0
    %275 = vmatprep.subr.mxu0 0.0
    %276 = vmatpush1.msra.mxu0 0.0
    %277 = vmatprep.subr.mxu0 0.0
    %278 = vmatpush1.msra.mxu0 0.0
    %279 = vmatprep.subr.mxu0 0.0
    %280 = vmatpush1.msra.mxu0 0.0
    %281 = vmatprep.subr.mxu0 0.0
    %282 = vmatpush1.msra.mxu0 0.0
    %283 = vmatprep.subr.mxu0 0.0
    %284 = vmatpush1.msra.mxu0 0.0
    %285 = vmatprep.subr.mxu0 0.0
    %286 = vmatpush1.msra.mxu0 0.0
    %287 = vmatprep.subr.mxu0 0.0
    %288 = vmatpush1.msra.mxu0 0.0
    %289 = vmatprep.subr.mxu0 0.0
    %290 = vmatpush1.msra.mxu0 0.0
    %291 = vmatprep.mubr.f32.mxu0 0.0
    %v292 = vand.u32 %v21, 4294901760
    %293 = vmatmul.mubr.f32.gmra.mrb[0].mxu0 %v292
    %v294 = vpop.f32.mrb[0].mxu0
    %v295 = vadd.f32 %v134, %v294
    %v296 = vpop.f32.mrb[0].mxu0
    %297 = vmatprep.mubr.f32.mxu0 0.0
    %v298 = vand.u32 %v22, 4294901760
    %299 = vmatmul.mubr.f32.gmra.mrb[0].mxu0 %v298
    %v300 = vpop.f32.mrb[0].mxu0
    %v301 = vadd.f32 %v144, %v300
    %v302 = vpop.f32.mrb[0].mxu0
    %303 = vdwg.mxu0
    %304 = vmatprep.subr.mxu0 0.0
    %v305 = vand.u32 %v23, 4294901760
    %v306 = vsub.f32 %v23, %v305
    %307 = vmatpush1.msra.mxu0 %v306
    %308 = vmatprep.subr.mxu0 0.0
    %v309 = vand.u32 %v24, 4294901760
    %v310 = vsub.f32 %v24, %v309
    %311 = vmatpush1.msra.mxu0 %v310
    %312 = vmatprep.subr.mxu0 0.0
    %v313 = vand.u32 %v25, 4294901760
    %v314 = vsub.f32 %v25, %v313
    %315 = vmatpush1.msra.mxu0 %v314
    %316 = vmatprep.subr.mxu0 0.0
    %v317 = vand.u32 %v26, 4294901760
    %v318 = vsub.f32 %v26, %v317
    %319 = vmatpush1.msra.mxu0 %v318
    %320 = vmatprep.subr.mxu0 0.0
    %v321 = vand.u32 %v27, 4294901760
    %v322 = vsub.f32 %v27, %v321
    %323 = vmatpush1.msra.mxu0 %v322
    %324 = vmatprep.subr.mxu0 0.0
    %v325 = vand.u32 %v28, 4294901760
    %v326 = vsub.f32 %v28, %v325
    %327 = vmatpush1.msra.mxu0 %v326
    %328 = vmatprep.subr.mxu0 0.0
    %v329 = vand.u32 %v29, 4294901760
    %v330 = vsub.f32 %v29, %v329
    %331 = vmatpush1.msra.mxu0 %v330
    %332 = vmatprep.subr.mxu0 0.0
    %v333 = vand.u32 %v30, 4294901760
    %v334 = vsub.f32 %v30, %v333
    %335 = vmatpush1.msra.mxu0 %v334
    %336 = vmatprep.subr.mxu0 0.0
    %v337 = vand.u32 %v31, 4294901760
    %v338 = vsub.f32 %v31, %v337
    %339 = vmatpush1.msra.mxu0 %v338
    %340 = vmatprep.subr.mxu0 0.0
    %v341 = vand.u32 %v32, 4294901760
    %v342 = vsub.f32 %v32, %v341
    %343 = vmatpush1.msra.mxu0 %v342
    %344 = vmatprep.subr.mxu0 0.0
    %v345 = vand.u32 %v33, 4294901760
    %v346 = vsub.f32 %v33, %v345
    %347 = vmatpush1.msra.mxu0 %v346
    %348 = vmatprep.subr.mxu0 0.0
    %v349 = vand.u32 %v34, 4294901760
    %v350 = vsub.f32 %v34, %v349
    %351 = vmatpush1.msra.mxu0 %v350
    %352 = vmatprep.subr.mxu0 0.0
    %v353 = vand.u32 %v35, 4294901760
    %v354 = vsub.f32 %v35, %v353
    %355 = vmatpush1.msra.mxu0 %v354
    %356 = vmatprep.subr.mxu0 0.0
    %v357 = vand.u32 %v36, 4294901760
    %v358 = vsub.f32 %v36, %v357
    %359 = vmatpush1.msra.mxu0 %v358
    %360 = vmatprep.subr.mxu0 0.0
    %v361 = vand.u32 %v37, 4294901760
    %v362 = vsub.f32 %v37, %v361
    %363 = vmatpush1.msra.mxu0 %v362
    %364 = vmatprep.subr.mxu0 0.0
    %v365 = vand.u32 %v38, 4294901760
    %v366 = vsub.f32 %v38, %v365
    %367 = vmatpush1.msra.mxu0 %v366
    %368 = vmatprep.subr.mxu0 0.0
    %369 = vmatpush1.msra.mxu0 0.0
    %370 = vmatprep.subr.mxu0 0.0
    %371 = vmatpush1.msra.mxu0 0.0
    %372 = vmatprep.subr.mxu0 0.0
    %373 = vmatpush1.msra.mxu0 0.0
    %374 = vmatprep.subr.mxu0 0.0
    %375 = vmatpush1.msra.mxu0 0.0
    %376 = vmatprep.subr.mxu0 0.0
    %377 = vmatpush1.msra.mxu0 0.0
    %378 = vmatprep.subr.mxu0 0.0
    %379 = vmatpush1.msra.mxu0 0.0
    %380 = vmatprep.subr.mxu0 0.0
    %381 = vmatpush1.msra.mxu0 0.0
    %382 = vmatprep.subr.mxu0 0.0
    %383 = vmatpush1.msra.mxu0 0.0
    %384 = vmatprep.subr.mxu0 0.0
    %385 = vmatpush1.msra.mxu0 0.0
    %386 = vmatprep.subr.mxu0 0.0
    %387 = vmatpush1.msra.mxu0 0.0
    %388 = vmatprep.subr.mxu0 0.0
    %389 = vmatpush1.msra.mxu0 0.0
    %390 = vmatprep.subr.mxu0 0.0
    %391 = vmatpush1.msra.mxu0 0.0
    %392 = vmatprep.subr.mxu0 0.0
    %393 = vmatpush1.msra.mxu0 0.0
    %394 = vmatprep.subr.mxu0 0.0
    %395 = vmatpush1.msra.mxu0 0.0
    %396 = vmatprep.subr.mxu0 0.0
    %397 = vmatpush1.msra.mxu0 0.0
    %398 = vmatprep.subr.mxu0 0.0
    %399 = vmatpush1.msra.mxu0 0.0
    %400 = vmatprep.mubr.f32.mxu0 0.0
    %v401 = vand.u32 %v21, 4294901760
    %v402 = vsub.f32 %v21, %v401
    %403 = vmatmul.mubr.f32.gmra.mrb[0].mxu0 %v402
    %v404 = vpop.f32.mrb[0].mxu0
    %v405 = vadd.f32 %v295, %v404
    %v406 = vpop.f32.mrb[0].mxu0
    %407 = vmatprep.mubr.f32.mxu0 0.0
    %v408 = vand.u32 %v22, 4294901760
    %v409 = vsub.f32 %v22, %v408
    %410 = vmatmul.mubr.f32.gmra.mrb[0].mxu0 %v409
    %v411 = vpop.f32.mrb[0].mxu0
    %v412 = vadd.f32 %v301, %v411
    %v413 = vpop.f32.mrb[0].mxu0
    %414 = vdwg.mxu0
    %415 = vmatprep.subr.mxu0 0.0
    %v416 = vand.u32 %v23, 4294901760
    %417 = vmatpush1.msra.mxu0 %v416
    %418 = vmatprep.subr.mxu0 0.0
    %v419 = vand.u32 %v24, 4294901760
    %420 = vmatpush1.msra.mxu0 %v419
    %421 = vmatprep.subr.mxu0 0.0
    %v422 = vand.u32 %v25, 4294901760
    %423 = vmatpush1.msra.mxu0 %v422
    %424 = vmatprep.subr.mxu0 0.0
    %v425 = vand.u32 %v26, 4294901760
    %426 = vmatpush1.msra.mxu0 %v425
    %427 = vmatprep.subr.mxu0 0.0
    %v428 = vand.u32 %v27, 4294901760
    %429 = vmatpush1.msra.mxu0 %v428
    %430 = vmatprep.subr.mxu0 0.0
    %v431 = vand.u32 %v28, 4294901760
    %432 = vmatpush1.msra.mxu0 %v431
    %433 = vmatprep.subr.mxu0 0.0
    %v434 = vand.u32 %v29, 4294901760
    %435 = vmatpush1.msra.mxu0 %v434
    %436 = vmatprep.subr.mxu0 0.0
    %v437 = vand.u32 %v30, 4294901760
    %438 = vmatpush1.msra.mxu0 %v437
    %439 = vmatprep.subr.mxu0 0.0
    %v440 = vand.u32 %v31, 4294901760
    %441 = vmatpush1.msra.mxu0 %v440
    %442 = vmatprep.subr.mxu0 0.0
    %v443 = vand.u32 %v32, 4294901760
    %444 = vmatpush1.msra.mxu0 %v443
    %445 = vmatprep.subr.mxu0 0.0
    %v446 = vand.u32 %v33, 4294901760
    %447 = vmatpush1.msra.mxu0 %v446
    %448 = vmatprep.subr.mxu0 0.0
    %v449 = vand.u32 %v34, 4294901760
    %450 = vmatpush1.msra.mxu0 %v449
    %451 = vmatprep.subr.mxu0 0.0
    %v452 = vand.u32 %v35, 4294901760
    %453 = vmatpush1.msra.mxu0 %v452
    %454 = vmatprep.subr.mxu0 0.0
    %v455 = vand.u32 %v36, 4294901760
    %456 = vmatpush1.msra.mxu0 %v455
    %457 = vmatprep.subr.mxu0 0.0
    %v458 = vand.u32 %v37, 4294901760
    %459 = vmatpush1.msra.mxu0 %v458
    %460 = vmatprep.subr.mxu0 0.0
    %v461 = vand.u32 %v38, 4294901760
    %462 = vmatpush1.msra.mxu0 %v461
    %463 = vmatprep.subr.mxu0 0.0
    %464 = vmatpush1.msra.mxu0 0.0
    %465 = vmatprep.subr.mxu0 0.0
    %466 = vmatpush1.msra.mxu0 0.0
    %467 = vmatprep.subr.mxu0 0.0
    %468 = vmatpush1.msra.mxu0 0.0
    %469 = vmatprep.subr.mxu0 0.0
    %470 = vmatpush1.msra.mxu0 0.0
    %471 = vmatprep.subr.mxu0 0.0
    %472 = vmatpush1.msra.mxu0 0.0
    %473 = vmatprep.subr.mxu0 0.0
    %474 = vmatpush1.msra.mxu0 0.0
    %475 = vmatprep.subr.mxu0 0.0
    %476 = vmatpush1.msra.mxu0 0.0
    %477 = vmatprep.subr.mxu0 0.0
    %478 = vmatpush1.msra.mxu0 0.0
    %479 = vmatprep.subr.mxu0 0.0
    %480 = vmatpush1.msra.mxu0 0.0
    %481 = vmatprep.subr.mxu0 0.0
    %482 = vmatpush1.msra.mxu0 0.0
    %483 = vmatprep.subr.mxu0 0.0
    %484 = vmatpush1.msra.mxu0 0.0
    %485 = vmatprep.subr.mxu0 0.0
    %486 = vmatpush1.msra.mxu0 0.0
    %487 = vmatprep.subr.mxu0 0.0
    %488 = vmatpush1.msra.mxu0 0.0
    %489 = vmatprep.subr.mxu0 0.0
    %490 = vmatpush1.msra.mxu0 0.0
    %491 = vmatprep.subr.mxu0 0.0
    %492 = vmatpush1.msra.mxu0 0.0
    %493 = vmatprep.subr.mxu0 0.0
    %494 = vmatpush1.msra.mxu0 0.0
    %495 = vmatprep.mubr.f32.mxu0 0.0
    %v496 = vand.u32 %v21, 4294901760
    %v497 = vsub.f32 %v21, %v496
    %v498 = vand.u32 %v497, 4294901760
    %499 = vmatmul.mubr.f32.gmra.mrb[0].mxu0 %v498
    %v500 = vpop.f32.mrb[0].mxu0
    %v501 = vadd.f32 %v405, %v500
    %v502 = vpop.f32.mrb[0].mxu0
    %503 = vmatprep.mubr.f32.mxu0 0.0
    %v504 = vand.u32 %v22, 4294901760
    %v505 = vsub.f32 %v22, %v504
    %v506 = vand.u32 %v505, 4294901760
    %507 = vmatmul.mubr.f32.gmra.mrb[0].mxu0 %v506
    %v508 = vpop.f32.mrb[0].mxu0
    %v509 = vadd.f32 %v412, %v508
    %v510 = vpop.f32.mrb[0].mxu0
    %511 = vdwg.mxu0
    %512 = vmatprep.subr.mxu0 0.0
    %v513 = vand.u32 %v23, 4294901760
    %v514 = vsub.f32 %v23, %v513
    %v515 = vand.u32 %v514, 4294901760
    %516 = vmatpush1.msra.mxu0 %v515
    %517 = vmatprep.subr.mxu0 0.0
    %v518 = vand.u32 %v24, 4294901760
    %v519 = vsub.f32 %v24, %v518
    %v520 = vand.u32 %v519, 4294901760
    %521 = vmatpush1.msra.mxu0 %v520
    %522 = vmatprep.subr.mxu0 0.0
    %v523 = vand.u32 %v25, 4294901760
    %v524 = vsub.f32 %v25, %v523
    %v525 = vand.u32 %v524, 4294901760
    %526 = vmatpush1.msra.mxu0 %v525
    %527 = vmatprep.subr.mxu0 0.0
    %v528 = vand.u32 %v26, 4294901760
    %v529 = vsub.f32 %v26, %v528
    %v530 = vand.u32 %v529, 4294901760
    %531 = vmatpush1.msra.mxu0 %v530
    %532 = vmatprep.subr.mxu0 0.0
    %v533 = vand.u32 %v27, 4294901760
    %v534 = vsub.f32 %v27, %v533
    %v535 = vand.u32 %v534, 4294901760
    %536 = vmatpush1.msra.mxu0 %v535
    %537 = vmatprep.subr.mxu0 0.0
    %v538 = vand.u32 %v28, 4294901760
    %v539 = vsub.f32 %v28, %v538
    %v540 = vand.u32 %v539, 4294901760
    %541 = vmatpush1.msra.mxu0 %v540
    %542 = vmatprep.subr.mxu0 0.0
    %v543 = vand.u32 %v29, 4294901760
    %v544 = vsub.f32 %v29, %v543
    %v545 = vand.u32 %v544, 4294901760
    %546 = vmatpush1.msra.mxu0 %v545
    %547 = vmatprep.subr.mxu0 0.0
    %v548 = vand.u32 %v30, 4294901760
    %v549 = vsub.f32 %v30, %v548
    %v550 = vand.u32 %v549, 4294901760
    %551 = vmatpush1.msra.mxu0 %v550
    %552 = vmatprep.subr.mxu0 0.0
    %v553 = vand.u32 %v31, 4294901760
    %v554 = vsub.f32 %v31, %v553
    %v555 = vand.u32 %v554, 4294901760
    %556 = vmatpush1.msra.mxu0 %v555
    %557 = vmatprep.subr.mxu0 0.0
    %v558 = vand.u32 %v32, 4294901760
    %v559 = vsub.f32 %v32, %v558
    %v560 = vand.u32 %v559, 4294901760
    %561 = vmatpush1.msra.mxu0 %v560
    %562 = vmatprep.subr.mxu0 0.0
    %v563 = vand.u32 %v33, 4294901760
    %v564 = vsub.f32 %v33, %v563
    %v565 = vand.u32 %v564, 4294901760
    %566 = vmatpush1.msra.mxu0 %v565
    %567 = vmatprep.subr.mxu0 0.0
    %v568 = vand.u32 %v34, 4294901760
    %v569 = vsub.f32 %v34, %v568
    %v570 = vand.u32 %v569, 4294901760
    %571 = vmatpush1.msra.mxu0 %v570
    %572 = vmatprep.subr.mxu0 0.0
    %v573 = vand.u32 %v35, 4294901760
    %v574 = vsub.f32 %v35, %v573
    %v575 = vand.u32 %v574, 4294901760
    %576 = vmatpush1.msra.mxu0 %v575
    %577 = vmatprep.subr.mxu0 0.0
    %v578 = vand.u32 %v36, 4294901760
    %v579 = vsub.f32 %v36, %v578
    %v580 = vand.u32 %v579, 4294901760
    %581 = vmatpush1.msra.mxu0 %v580
    %582 = vmatprep.subr.mxu0 0.0
    %v583 = vand.u32 %v37, 4294901760
    %v584 = vsub.f32 %v37, %v583
    %v585 = vand.u32 %v584, 4294901760
    %586 = vmatpush1.msra.mxu0 %v585
    %587 = vmatprep.subr.mxu0 0.0
    %v588 = vand.u32 %v38, 4294901760
    %v589 = vsub.f32 %v38, %v588
    %v590 = vand.u32 %v589, 4294901760
    %591 = vmatpush1.msra.mxu0 %v590
    %592 = vmatprep.subr.mxu0 0.0
    %593 = vmatpush1.msra.mxu0 0.0
    %594 = vmatprep.subr.mxu0 0.0
    %595 = vmatpush1.msra.mxu0 0.0
    %596 = vmatprep.subr.mxu0 0.0
    %597 = vmatpush1.msra.mxu0 0.0
    %598 = vmatprep.subr.mxu0 0.0
    %599 = vmatpush1.msra.mxu0 0.0
    %600 = vmatprep.subr.mxu0 0.0
    %601 = vmatpush1.msra.mxu0 0.0
    %602 = vmatprep.subr.mxu0 0.0
    %603 = vmatpush1.msra.mxu0 0.0
    %604 = vmatprep.subr.mxu0 0.0
    %605 = vmatpush1.msra.mxu0 0.0
    %606 = vmatprep.subr.mxu0 0.0
    %607 = vmatpush1.msra.mxu0 0.0
    %608 = vmatprep.subr.mxu0 0.0
    %609 = vmatpush1.msra.mxu0 0.0
    %610 = vmatprep.subr.mxu0 0.0
    %611 = vmatpush1.msra.mxu0 0.0
    %612 = vmatprep.subr.mxu0 0.0
    %613 = vmatpush1.msra.mxu0 0.0
    %614 = vmatprep.subr.mxu0 0.0
    %615 = vmatpush1.msra.mxu0 0.0
    %616 = vmatprep.subr.mxu0 0.0
    %617 = vmatpush1.msra.mxu0 0.0
    %618 = vmatprep.subr.mxu0 0.0
    %619 = vmatpush1.msra.mxu0 0.0
    %620 = vmatprep.subr.mxu0 0.0
    %621 = vmatpush1.msra.mxu0 0.0
    %622 = vmatprep.subr.mxu0 0.0
    %623 = vmatpush1.msra.mxu0 0.0
    %624 = vmatprep.mubr.f32.mxu0 0.0
    %v625 = vand.u32 %v21, 4294901760
    %626 = vmatmul.mubr.f32.gmra.mrb[0].mxu0 %v625
    %v627 = vpop.f32.mrb[0].mxu0
    %v628 = vadd.f32 %v501, %v627
    %v629 = vpop.f32.mrb[0].mxu0
    %630 = vmatprep.mubr.f32.mxu0 0.0
    %v631 = vand.u32 %v22, 4294901760
    %632 = vmatmul.mubr.f32.gmra.mrb[0].mxu0 %v631
    %v633 = vpop.f32.mrb[0].mxu0
    %v634 = vadd.f32 %v509, %v633
    %v635 = vpop.f32.mrb[0].mxu0
    %636 = vdwg.mxu0
    %637 = vmatprep.subr.mxu0 0.0
    %v638 = vand.u32 %v23, 4294901760
    %639 = vmatpush1.msra.mxu0 %v638
    %640 = vmatprep.subr.mxu0 0.0
    %v641 = vand.u32 %v24, 4294901760
    %642 = vmatpush1.msra.mxu0 %v641
    %643 = vmatprep.subr.mxu0 0.0
    %v644 = vand.u32 %v25, 4294901760
    %645 = vmatpush1.msra.mxu0 %v644
    %646 = vmatprep.subr.mxu0 0.0
    %v647 = vand.u32 %v26, 4294901760
    %648 = vmatpush1.msra.mxu0 %v647
    %649 = vmatprep.subr.mxu0 0.0
    %v650 = vand.u32 %v27, 4294901760
    %651 = vmatpush1.msra.mxu0 %v650
    %652 = vmatprep.subr.mxu0 0.0
    %v653 = vand.u32 %v28, 4294901760
    %654 = vmatpush1.msra.mxu0 %v653
    %655 = vmatprep.subr.mxu0 0.0
    %v656 = vand.u32 %v29, 4294901760
    %657 = vmatpush1.msra.mxu0 %v656
    %658 = vmatprep.subr.mxu0 0.0
    %v659 = vand.u32 %v30, 4294901760
    %660 = vmatpush1.msra.mxu0 %v659
    %661 = vmatprep.subr.mxu0 0.0
    %v662 = vand.u32 %v31, 4294901760
    %663 = vmatpush1.msra.mxu0 %v662
    %664 = vmatprep.subr.mxu0 0.0
    %v665 = vand.u32 %v32, 4294901760
    %666 = vmatpush1.msra.mxu0 %v665
    %667 = vmatprep.subr.mxu0 0.0
    %v668 = vand.u32 %v33, 4294901760
    %669 = vmatpush1.msra.mxu0 %v668
    %670 = vmatprep.subr.mxu0 0.0
    %v671 = vand.u32 %v34, 4294901760
    %672 = vmatpush1.msra.mxu0 %v671
    %673 = vmatprep.subr.mxu0 0.0
    %v674 = vand.u32 %v35, 4294901760
    %675 = vmatpush1.msra.mxu0 %v674
    %676 = vmatprep.subr.mxu0 0.0
    %v677 = vand.u32 %v36, 4294901760
    %678 = vmatpush1.msra.mxu0 %v677
    %679 = vmatprep.subr.mxu0 0.0
    %v680 = vand.u32 %v37, 4294901760
    %681 = vmatpush1.msra.mxu0 %v680
    %682 = vmatprep.subr.mxu0 0.0
    %v683 = vand.u32 %v38, 4294901760
    %684 = vmatpush1.msra.mxu0 %v683
    %685 = vmatprep.subr.mxu0 0.0
    %686 = vmatpush1.msra.mxu0 0.0
    %687 = vmatprep.subr.mxu0 0.0
    %688 = vmatpush1.msra.mxu0 0.0
    %689 = vmatprep.subr.mxu0 0.0
    %690 = vmatpush1.msra.mxu0 0.0
    %691 = vmatprep.subr.mxu0 0.0
    %692 = vmatpush1.msra.mxu0 0.0
    %693 = vmatprep.subr.mxu0 0.0
    %694 = vmatpush1.msra.mxu0 0.0
    %695 = vmatprep.subr.mxu0 0.0
    %696 = vmatpush1.msra.mxu0 0.0
    %697 = vmatprep.subr.mxu0 0.0
    %698 = vmatpush1.msra.mxu0 0.0
    %699 = vmatprep.subr.mxu0 0.0
    %700 = vmatpush1.msra.mxu0 0.0
    %701 = vmatprep.subr.mxu0 0.0
    %702 = vmatpush1.msra.mxu0 0.0
    %703 = vmatprep.subr.mxu0 0.0
    %704 = vmatpush1.msra.mxu0 0.0
    %705 = vmatprep.subr.mxu0 0.0
    %706 = vmatpush1.msra.mxu0 0.0
    %707 = vmatprep.subr.mxu0 0.0
    %708 = vmatpush1.msra.mxu0 0.0
    %709 = vmatprep.subr.mxu0 0.0
    %710 = vmatpush1.msra.mxu0 0.0
    %711 = vmatprep.subr.mxu0 0.0
    %712 = vmatpush1.msra.mxu0 0.0
    %713 = vmatprep.subr.mxu0 0.0
    %714 = vmatpush1.msra.mxu0 0.0
    %715 = vmatprep.subr.mxu0 0.0
    %716 = vmatpush1.msra.mxu0 0.0
    %717 = vmatprep.mubr.f32.mxu0 0.0
    %v718 = vand.u32 %v21, 4294901760
    %719 = vmatmul.mubr.f32.gmra.mrb[0].mxu0 %v718
    %v720 = vpop.f32.mrb[0].mxu0
    %v721 = vadd.f32 %v628, %v720
    %v722 = vpop.f32.mrb[0].mxu0
    %723 = vmatprep.mubr.f32.mxu0 0.0
    %v724 = vand.u32 %v22, 4294901760
    %725 = vmatmul.mubr.f32.gmra.mrb[0].mxu0 %v724
    %v726 = vpop.f32.mrb[0].mxu0
    %v727 = vadd.f32 %v634, %v726
    %v728 = vpop.f32.mrb[0].mxu0
    %729 = vdwg.mxu0
    %v730 = vand.u32 2147483647, %v721
    %vm731 = vcmp.le.f32.partialorder %v730, 0.7853982
    %vm732 = vcmp.lt.s32.totalorder %v721, 0
    %v733 = vand.u32 %v721, 2139095040
    %v734 = vshrl.u32 %v733, 23
    %v735 = vsub.s32 %v734, 127
    %v736 = vand.u32 2147483647, %v721
    %v737 = vand.u32 %v736, 8388607
    %v738 = vor.u32 %v737, 8388608
    %v739 = vsub.s32 0, %v738
    %v740 = vadd.s32 %v735, 1
    %vm741 = vcmp.gt.s32.totalorder %v740, 0
    %v742 = vsel %vm741, %v740, 0
    %v743 = vshrl.u32 %v742, 5
    %v744 = vand.u32 %v742, 31
    %v745 = vsub.s32 32, %v744
    %v746 = vshrl.u32 683565275, %v745
    %v747 = vshll.u32 683565275, %v744
    %v748 = vshrl.u32 2475754826, %v745
    %v749 = vor.u32 %v747, %v748
    %v750 = vshll.u32 2475754826, %v744
    %v751 = vshrl.u32 2131351028, %v745
    %v752 = vor.u32 %v750, %v751
    %v753 = vshll.u32 2131351028, %v744
    %v754 = vshrl.u32 2102212464, %v745
    %v755 = vor.u32 %v753, %v754
    %v756 = vshll.u32 2102212464, %v744
    %v757 = vshrl.u32 920167782, %v745
    %v758 = vor.u32 %v756, %v757
    %v759 = vshll.u32 920167782, %v744
    %v760 = vshrl.u32 1326507024, %v745
    %v761 = vor.u32 %v759, %v760
    %vm762 = vcmp.lt.s32.totalorder %v743, 1
    %vm763 = vcmp.lt.s32.totalorder %v743, 2
    %vm764 = vcmp.lt.s32.totalorder %v743, 3
    %vm765 = vcmp.lt.s32.totalorder %v743, 4
    %v766 = vsel %vm762, %v746, %v749
    %v767 = vsel %vm765, %v755, 2102212464
    %v768 = vsel %vm764, %v752, %v767
    %v769 = vsel %vm763, %v766, %v768
    %v770 = vsel %vm762, %v749, %v752
    %v771 = vsel %vm765, %v758, 920167782
    %v772 = vsel %vm764, %v755, %v771
    %v773 = vsel %vm763, %v770, %v772
    %v774 = vsel %vm762, %v752, %v755
    %v775 = vsel %vm765, %v761, 1326507024
    %v776 = vsel %vm764, %v758, %v775
    %v777 = vsel %vm763, %v774, %v776
    %v778 = vshll.u32 %v738, 8
    %v779 = vmul.u32.u64.compose %v778, %v777
    %v780 = vextract.low.u32 %v779
    %v781 = vextract.high.u32 %v779
    %v782 = vmul.u32.u64.compose %v778, %v773
    %v783 = vextract.low.u32 %v782
    %v784 = vextract.high.u32 %v782
    %v785 = vmul.u32 %v778, %v769
    %v786 = vadd.s32 %v781, %v783
    %vm787 = vc.u32 %v781, %v783
    %v788 = vadd.s32 %v784, 1
    %v789 = vsel %vm787, %v788, %v784
    %v790 = vadd.s32 %v785, %v789
    %v791 = vadd.s32 %v790, 536870912
    %v792 = vshrl.u32 %v791, 30
    %v793 = vshll.u32 %v792, 30
    %v794 = vsub.s32 %v790, %v793
    %vm795 = vcmp.lt.s32.totalorder %v794, 0
    %v796 = vsub.s32 0, %v794
    %v797 = vsel %vm795, %v796, %v794
    %v798 = vclz %v797
    %v799 = vsub.s32 %v798, 2
    %vm800 = vcmp.gt.s32.totalorder 0, %v799
    %v801 = vsel %vm800, 0, %v799
    %v802 = vsub.s32 32, %v801
    %v803 = vshll.u32 %v794, %v801
    %v804 = vshrl.u32 %v786, %v802
    %v805 = vor.u32 %v803, %v804
    %v806 = vsub.s32 4294967266, %v801
    %v807 = vadd.s32 %v806, 127
    %v808 = vshll.u32 %v807, 23
    %v809 = vor.u32 4788187, %v808
    %v810 = vand.u32 2147483647, %v809
    %v812 = vcvt.s32.f32 %v805
    %v813 = vmul.f32 %v812, %v810
    %v814 = vxor.u32 %v813, 2147483648
    %v815 = vsel %vm732, %v814, %v813
    %v816 = vsub.s32 4, %v792
    %v817 = vsel %vm732, %v816, %v792
    %v818 = vsel %vm731, %v721, %v815
    %v819 = vsel %vm731, 0, %v817
    %v820 = vcosq.f32.pop %v818
    %v821 = vsinq.f32.pop %v818
    %vm822 = vweird.f32 %v721
    %v823 = vand.u32 %v819, 3
    %vm824 = vcmp.lt.s32.totalorder %v823, 2
    %vm825 = vcmp.eq.s32.totalorder %v823, 0
    %v826 = vxor.u32 %v821, 2147483648
    %v827 = vsel %vm825, %v820, %v826
    %vm828 = vcmp.eq.s32.totalorder %v823, 2
    %v829 = vxor.u32 %v820, 2147483648
    %v830 = vsel %vm828, %v829, %v821
    %v831 = vsel %vm824, %v827, %v830
    %v832 = vsel %vm822, nan, %v831
    %v833 = vand.u32 2147483647, %v727
    %vm834 = vcmp.le.f32.partialorder %v833, 0.7853982
    %vm835 = vcmp.lt.s32.totalorder %v727, 0
    %v836 = vand.u32 %v727, 2139095040
    %v837 = vshrl.u32 %v836, 23
    %v838 = vsub.s32 %v837, 127
    %v839 = vand.u32 2147483647, %v727
    %v840 = vand.u32 %v839, 8388607
    %v841 = vor.u32 %v840, 8388608
    %v842 = vsub.s32 0, %v841
    %v843 = vadd.s32 %v838, 1
    %vm844 = vcmp.gt.s32.totalorder %v843, 0
    %v845 = vsel %vm844, %v843, 0
    %v846 = vshrl.u32 %v845, 5
    %v847 = vand.u32 %v845, 31
    %v848 = vsub.s32 32, %v847
    %v849 = vshrl.u32 683565275, %v848
    %v850 = vshll.u32 683565275, %v847
    %v851 = vshrl.u32 2475754826, %v848
    %v852 = vor.u32 %v850, %v851
    %v853 = vshll.u32 2475754826, %v847
    %v854 = vshrl.u32 2131351028, %v848
    %v855 = vor.u32 %v853, %v854
    %v856 = vshll.u32 2131351028, %v847
    %v857 = vshrl.u32 2102212464, %v848
    %v858 = vor.u32 %v856, %v857
    %v859 = vshll.u32 2102212464, %v847
    %v860 = vshrl.u32 920167782, %v848
    %v861 = vor.u32 %v859, %v860
    %v862 = vshll.u32 920167782, %v847
    %v863 = vshrl.u32 1326507024, %v848
    %v864 = vor.u32 %v862, %v863
    %vm865 = vcmp.lt.s32.totalorder %v846, 1
    %vm866 = vcmp.lt.s32.totalorder %v846, 2
    %vm867 = vcmp.lt.s32.totalorder %v846, 3
    %vm868 = vcmp.lt.s32.totalorder %v846, 4
    %v869 = vsel %vm865, %v849, %v852
    %v870 = vsel %vm868, %v858, 2102212464
    %v871 = vsel %vm867, %v855, %v870
    %v872 = vsel %vm866, %v869, %v871
    %v873 = vsel %vm865, %v852, %v855
    %v874 = vsel %vm868, %v861, 920167782
    %v875 = vsel %vm867, %v858, %v874
    %v876 = vsel %vm866, %v873, %v875
    %v877 = vsel %vm865, %v855, %v858
    %v878 = vsel %vm868, %v864, 1326507024
    %v879 = vsel %vm867, %v861, %v878
    %v880 = vsel %vm866, %v877, %v879
    %v881 = vshll.u32 %v841, 8
    %v882 = vmul.u32.u64.compose %v881, %v880
    %v883 = vextract.low.u32 %v882
    %v884 = vextract.high.u32 %v882
    %v885 = vmul.u32.u64.compose %v881, %v876
    %v886 = vextract.low.u32 %v885
    %v887 = vextract.high.u32 %v885
    %v888 = vmul.u32 %v881, %v872
    %v889 = vadd.s32 %v884, %v886
    %vm890 = vc.u32 %v884, %v886
    %v891 = vadd.s32 %v887, 1
    %v892 = vsel %vm890, %v891, %v887
    %v893 = vadd.s32 %v888, %v892
    %v894 = vadd.s32 %v893, 536870912
    %v895 = vshrl.u32 %v894, 30
    %v896 = vshll.u32 %v895, 30
    %v897 = vsub.s32 %v893, %v896
    %vm898 = vcmp.lt.s32.totalorder %v897, 0
    %v899 = vsub.s32 0, %v897
    %v900 = vsel %vm898, %v899, %v897
    %v901 = vclz %v900
    %v902 = vsub.s32 %v901, 2
    %vm903 = vcmp.gt.s32.totalorder 0, %v902
    %v904 = vsel %vm903, 0, %v902
    %v905 = vsub.s32 32, %v904
    %v906 = vshll.u32 %v897, %v904
    %v907 = vshrl.u32 %v889, %v905
    %v908 = vor.u32 %v906, %v907
    %v909 = vsub.s32 4294967266, %v904
    %v910 = vadd.s32 %v909, 127
    %v911 = vshll.u32 %v910, 23
    %v912 = vor.u32 4788187, %v911
    %v913 = vand.u32 2147483647, %v912
    %v915 = vcvt.s32.f32 %v908
    %v916 = vmul.f32 %v915, %v913
    %v917 = vxor.u32 %v916, 2147483648
    %v918 = vsel %vm835, %v917, %v916
    %v919 = vsub.s32 4, %v895
    %v920 = vsel %vm835, %v919, %v895
    %v921 = vsel %vm834, %v727, %v918
    %v922 = vsel %vm834, 0, %v920
    %v923 = vcosq.f32.pop %v921
    %v924 = vsinq.f32.pop %v921
    %vm925 = vweird.f32 %v727
    %v926 = vand.u32 %v922, 3
    %vm927 = vcmp.lt.s32.totalorder %v926, 2
    %vm928 = vcmp.eq.s32.totalorder %v926, 0
    %v929 = vxor.u32 %v924, 2147483648
    %v930 = vsel %vm928, %v923, %v929
    %vm931 = vcmp.eq.s32.totalorder %v926, 2
    %v932 = vxor.u32 %v923, 2147483648
    %v933 = vsel %vm931, %v932, %v924
    %v934 = vsel %vm927, %v930, %v933
    %v935 = vsel %vm925, nan, %v934
    %938 = vrot.lane.b32.xlu0 %v832, 127
    %v939 = vpop.permute.xlu0 %938
    %940 = vrot.lane.b32.xlu0 %v935, 127
    %v941 = vpop.permute.xlu0 %940
    %v944 = vmul.f32 %v832, %v939
    %v945 = vmul.f32 %v935, %v941
    %946 = vrot.lane.b32.xlu0 %v832, 126
    %v947 = vpop.permute.xlu0 %946
    %948 = vrot.lane.b32.xlu0 %v935, 126
    %v949 = vpop.permute.xlu0 %948
    %v952 = vmul.f32 %v944, %v947
    %v953 = vmul.f32 %v945, %v949
    %954 = vrot.lane.b32.xlu0 %v832, 125
    %v955 = vpop.permute.xlu0 %954
    %956 = vrot.lane.b32.xlu0 %v935, 125
    %v957 = vpop.permute.xlu0 %956
    %v960 = vmul.f32 %v952, %v955
    %v961 = vmul.f32 %v953, %v957
    %962 = vrot.lane.b32.xlu0 %v832, 124
    %v963 = vpop.permute.xlu0 %962
    %964 = vrot.lane.b32.xlu0 %v935, 124
    %v965 = vpop.permute.xlu0 %964
    %v968 = vmul.f32 %v960, %v963
    %v969 = vmul.f32 %v961, %v965
    %970 = vrot.lane.b32.xlu0 %v832, 123
    %v971 = vpop.permute.xlu0 %970
    %972 = vrot.lane.b32.xlu0 %v935, 123
    %v973 = vpop.permute.xlu0 %972
    %v976 = vmul.f32 %v968, %v971
    %v977 = vmul.f32 %v969, %v973
    %978 = vrot.lane.b32.xlu0 %v832, 122
    %v979 = vpop.permute.xlu0 %978
    %980 = vrot.lane.b32.xlu0 %v935, 122
    %v981 = vpop.permute.xlu0 %980
    %v984 = vmul.f32 %v976, %v979
    %v985 = vmul.f32 %v977, %v981
    %988 = vrot.lane.b32.xlu0 %v944, 127
    %v989 = vpop.permute.xlu0 %988
    %990 = vrot.lane.b32.xlu0 %v945, 127
    %v991 = vpop.permute.xlu0 %990
    %v994 = vmul.f32 %v832, %v989
    %v995 = vmul.f32 %v935, %v991
    %998 = vrot.lane.b32.xlu0 %v952, 127
    %v999 = vpop.permute.xlu0 %998
    %1000 = vrot.lane.b32.xlu0 %v953, 127
    %v1001 = vpop.permute.xlu0 %1000
    %v1004 = vmul.f32 %v832, %v999
    %v1005 = vmul.f32 %v935, %v1001
    %1008 = vrot.lane.b32.xlu0 %v960, 127
    %v1009 = vpop.permute.xlu0 %1008
    %1010 = vrot.lane.b32.xlu0 %v961, 127
    %v1011 = vpop.permute.xlu0 %1010
    %v1014 = vmul.f32 %v832, %v1009
    %v1015 = vmul.f32 %v935, %v1011
    %1018 = vrot.lane.b32.xlu0 %v968, 127
    %v1019 = vpop.permute.xlu0 %1018
    %1020 = vrot.lane.b32.xlu0 %v969, 127
    %v1021 = vpop.permute.xlu0 %1020
    %v1024 = vmul.f32 %v832, %v1019
    %v1025 = vmul.f32 %v935, %v1021
    %1028 = vrot.lane.b32.xlu0 %v976, 127
    %v1029 = vpop.permute.xlu0 %1028
    %1030 = vrot.lane.b32.xlu0 %v977, 127
    %v1031 = vpop.permute.xlu0 %1030
    %v1034 = vmul.f32 %v832, %v1029
    %v1035 = vmul.f32 %v935, %v1031
    %1038 = vrot.lane.b32.xlu0 %v984, 127
    %v1039 = vpop.permute.xlu0 %1038
    %1040 = vrot.lane.b32.xlu0 %v985, 127
    %v1041 = vpop.permute.xlu0 %1040
    %v1044 = vmul.f32 %v832, %v1039
    %v1045 = vmul.f32 %v935, %v1041
    %v1046 = vlaneseq
    %v1047 = vand.u32 %v1046, 127
    %vm1048 = vcmp.eq.s32.totalorder %v1047, 0
    %1049 = vset.pattern.permute.xlu0 1
    %1050 = vperm.xlu0 %1049, %v984
    %v1051 = vpop.permute.xlu0 %1050
    %1053 = vset.pattern.permute.xlu0 1
    %1054 = vperm.xlu0 %1053, %v985
    %v1055 = vpop.permute.xlu0 %1054
    %v1057 = vsel %vm1048, %v1051, 0.0
    %v1058 = vsel %vm1048, %v1055, 0.0
    %vm1059 = vcmp.eq.s32.totalorder %v1047, 1
    %1060 = vset.pattern.permute.xlu0 0
    %1061 = vperm.xlu0 %1060, %v944
    %v1062 = vpop.permute.xlu0 %1061
    %1064 = vset.pattern.permute.xlu0 0
    %1065 = vperm.xlu0 %1064, %v945
    %v1066 = vpop.permute.xlu0 %1065
    %v1068 = vsel %vm1059, %v1062, %v1057
    %v1069 = vsel %vm1059, %v1066, %v1058
    %vm1070 = vcmp.eq.s32.totalorder %v1047, 2
    %1072 = vset.pattern.permute.xlu0 0
    %1073 = vperm.xlu0 %1072, %v994
    %v1074 = vpop.permute.xlu0 %1073
    %1077 = vset.pattern.permute.xlu0 0
    %1078 = vperm.xlu0 %1077, %v995
    %v1079 = vpop.permute.xlu0 %1078
    %v1081 = vsel %vm1070, %v1074, %v1068
    %v1082 = vsel %vm1070, %v1079, %v1069
    %vm1083 = vcmp.eq.s32.totalorder %v1047, 3
    %1085 = vset.pattern.permute.xlu0 0
    %1086 = vperm.xlu0 %1085, %v1004
    %v1087 = vpop.permute.xlu0 %1086
    %1090 = vset.pattern.permute.xlu0 0
    %1091 = vperm.xlu0 %1090, %v1005
    %v1092 = vpop.permute.xlu0 %1091
    %v1094 = vsel %vm1083, %v1087, %v1081
    %v1095 = vsel %vm1083, %v1092, %v1082
    %vm1096 = vcmp.eq.s32.totalorder %v1047, 4
    %1098 = vset.pattern.permute.xlu0 0
    %1099 = vperm.xlu0 %1098, %v1014
    %v1100 = vpop.permute.xlu0 %1099
    %1103 = vset.pattern.permute.xlu0 0
    %1104 = vperm.xlu0 %1103, %v1015
    %v1105 = vpop.permute.xlu0 %1104
    %v1107 = vsel %vm1096, %v1100, %v1094
    %v1108 = vsel %vm1096, %v1105, %v1095
    %vm1109 = vcmp.eq.s32.totalorder %v1047, 5
    %1111 = vset.pattern.permute.xlu0 0
    %1112 = vperm.xlu0 %1111, %v1024
    %v1113 = vpop.permute.xlu0 %1112
    %1116 = vset.pattern.permute.xlu0 0
    %1117 = vperm.xlu0 %1116, %v1025
    %v1118 = vpop.permute.xlu0 %1117
    %v1120 = vsel %vm1109, %v1113, %v1107
    %v1121 = vsel %vm1109, %v1118, %v1108
    %vm1122 = vcmp.eq.s32.totalorder %v1047, 6
    %1124 = vset.pattern.permute.xlu0 0
    %1125 = vperm.xlu0 %1124, %v1034
    %v1126 = vpop.permute.xlu0 %1125
    %1129 = vset.pattern.permute.xlu0 0
    %1130 = vperm.xlu0 %1129, %v1035
    %v1131 = vpop.permute.xlu0 %1130
    %v1133 = vsel %vm1122, %v1126, %v1120
    %v1134 = vsel %vm1122, %v1131, %v1121
    %vm1135 = vcmp.eq.s32.totalorder %v1047, 7
    %1137 = vset.pattern.permute.xlu0 0
    %1138 = vperm.xlu0 %1137, %v1044
    %v1139 = vpop.permute.xlu0 %1138
    %1142 = vset.pattern.permute.xlu0 0
    %1143 = vperm.xlu0 %1142, %v1045
    %v1144 = vpop.permute.xlu0 %1143
    %v1146 = vsel %vm1135, %v1139, %v1133
    %v1147 = vsel %vm1135, %v1144, %v1134
    %v1148 = vld [vmem:[%s3] sm:$0xff]
    %v1149 = vld [vmem:[%s4] sm:$0x1]
    %v1151 = vlaneseq
    %v1152 = vshrl.u32 %v1151, 7
    %v1153 = vsub.s32 0, %v1152
    %v1154 = vrot.slane %v1149, %v1153
    %vm1156 = vcmask 64512
    %v1158 = vsel %vm1156, %v1146, 0
    %v1161 = vsel %vm1156, %v1147, 0
    %1163 = vmatprep.subr.mxu0 0.0
    %v1164 = vand.u32 %v1148, 4294901760
    %1165 = vmatpush1.msra.mxu0 %v1164
    %1166 = vmatprep.subr.mxu0 0.0
    %1167 = vmatpush1.msra.mxu0 0.0
    %1168 = vmatprep.subr.mxu0 0.0
    %1169 = vmatpush1.msra.mxu0 0.0
    %1170 = vmatprep.subr.mxu0 0.0
    %1171 = vmatpush1.msra.mxu0 0.0
    %1172 = vmatprep.subr.mxu0 0.0
    %1173 = vmatpush1.msra.mxu0 0.0
    %1174 = vmatprep.subr.mxu0 0.0
    %1175 = vmatpush1.msra.mxu0 0.0
    %1176 = vmatprep.subr.mxu0 0.0
    %1177 = vmatpush1.msra.mxu0 0.0
    %1178 = vmatprep.subr.mxu0 0.0
    %1179 = vmatpush1.msra.mxu0 0.0
    %1180 = vmatprep.subr.mxu0 0.0
    %1181 = vmatpush1.msra.mxu0 0.0
    %1182 = vmatprep.subr.mxu0 0.0
    %1183 = vmatpush1.msra.mxu0 0.0
    %1184 = vmatprep.subr.mxu0 0.0
    %1185 = vmatpush1.msra.mxu0 0.0
    %1186 = vmatprep.subr.mxu0 0.0
    %1187 = vmatpush1.msra.mxu0 0.0
    %1188 = vmatprep.subr.mxu0 0.0
    %1189 = vmatpush1.msra.mxu0 0.0
    %1190 = vmatprep.subr.mxu0 0.0
    %1191 = vmatpush1.msra.mxu0 0.0
    %1192 = vmatprep.subr.mxu0 0.0
    %1193 = vmatpush1.msra.mxu0 0.0
    %1194 = vmatprep.subr.mxu0 0.0
    %1195 = vmatpush1.msra.mxu0 0.0
    %1196 = vmatprep.subr.mxu0 0.0
    %1197 = vmatpush1.msra.mxu0 0.0
    %1198 = vmatprep.subr.mxu0 0.0
    %1199 = vmatpush1.msra.mxu0 0.0
    %1200 = vmatprep.subr.mxu0 0.0
    %1201 = vmatpush1.msra.mxu0 0.0
    %1202 = vmatprep.subr.mxu0 0.0
    %1203 = vmatpush1.msra.mxu0 0.0
    %1204 = vmatprep.subr.mxu0 0.0
    %1205 = vmatpush1.msra.mxu0 0.0
    %1206 = vmatprep.subr.mxu0 0.0
    %1207 = vmatpush1.msra.mxu0 0.0
    %1208 = vmatprep.subr.mxu0 0.0
    %1209 = vmatpush1.msra.mxu0 0.0
    %1210 = vmatprep.subr.mxu0 0.0
    %1211 = vmatpush1.msra.mxu0 0.0
    %1212 = vmatprep.subr.mxu0 0.0
    %1213 = vmatpush1.msra.mxu0 0.0
    %1214 = vmatprep.subr.mxu0 0.0
    %1215 = vmatpush1.msra.mxu0 0.0
    %1216 = vmatprep.subr.mxu0 0.0
    %1217 = vmatpush1.msra.mxu0 0.0
    %1218 = vmatprep.subr.mxu0 0.0
    %1219 = vmatpush1.msra.mxu0 0.0
    %1220 = vmatprep.subr.mxu0 0.0
    %1221 = vmatpush1.msra.mxu0 0.0
    %1222 = vmatprep.subr.mxu0 0.0
    %1223 = vmatpush1.msra.mxu0 0.0
    %1224 = vmatprep.subr.mxu0 0.0
    %1225 = vmatpush1.msra.mxu0 0.0
    %1226 = vmatprep.subr.mxu0 0.0
    %1227 = vmatpush1.msra.mxu0 0.0
    %1228 = vmatprep.mubr.f32.mxu0 0.0
    %v1229 = vand.u32 %v1158, 4294901760
    %v1230 = vsub.f32 %v1158, %v1229
    %v1231 = vand.u32 %v1230, 4294901760
    %v1232 = vsub.f32 %v1230, %v1231
    %v1233 = vand.u32 %v1232, 4294901760
    %1234 = vmatmul.mubr.f32.gmra.mrb[0].mxu0 %v1233
    %v1235 = vpop.f32.mrb[0].mxu0
    %v1236 = vadd.f32 %v1154, %v1235
    %v1237 = vpop.f32.mrb[0].mxu0
    %1238 = vmatprep.mubr.f32.mxu0 0.0
    %v1239 = vand.u32 %v1161, 4294901760
    %v1240 = vsub.f32 %v1161, %v1239
    %v1241 = vand.u32 %v1240, 4294901760
    %v1242 = vsub.f32 %v1240, %v1241
    %v1243 = vand.u32 %v1242, 4294901760
    %1244 = vmatmul.mubr.f32.gmra.mrb[0].mxu0 %v1243
    %v1245 = vpop.f32.mrb[0].mxu0
    %v1246 = vadd.f32 %v1154, %v1245
    %v1247 = vpop.f32.mrb[0].mxu0
    %1248 = vdwg.mxu0
    %1249 = vmatprep.subr.mxu0 0.0
    %v1250 = vand.u32 %v1148, 4294901760
    %v1251 = vsub.f32 %v1148, %v1250
    %v1252 = vand.u32 %v1251, 4294901760
    %v1253 = vsub.f32 %v1251, %v1252
    %v1254 = vand.u32 %v1253, 4294901760
    %1255 = vmatpush1.msra.mxu0 %v1254
    %1256 = vmatprep.subr.mxu0 0.0
    %1257 = vmatpush1.msra.mxu0 0.0
    %1258 = vmatprep.subr.mxu0 0.0
    %1259 = vmatpush1.msra.mxu0 0.0
    %1260 = vmatprep.subr.mxu0 0.0
    %1261 = vmatpush1.msra.mxu0 0.0
    %1262 = vmatprep.subr.mxu0 0.0
    %1263 = vmatpush1.msra.mxu0 0.0
    %1264 = vmatprep.subr.mxu0 0.0
    %1265 = vmatpush1.msra.mxu0 0.0
    %1266 = vmatprep.subr.mxu0 0.0
    %1267 = vmatpush1.msra.mxu0 0.0
    %1268 = vmatprep.subr.mxu0 0.0
    %1269 = vmatpush1.msra.mxu0 0.0
    %1270 = vmatprep.subr.mxu0 0.0
    %1271 = vmatpush1.msra.mxu0 0.0
    %1272 = vmatprep.subr.mxu0 0.0
    %1273 = vmatpush1.msra.mxu0 0.0
    %1274 = vmatprep.subr.mxu0 0.0
    %1275 = vmatpush1.msra.mxu0 0.0
    %1276 = vmatprep.subr.mxu0 0.0
    %1277 = vmatpush1.msra.mxu0 0.0
    %1278 = vmatprep.subr.mxu0 0.0
    %1279 = vmatpush1.msra.mxu0 0.0
    %1280 = vmatprep.subr.mxu0 0.0
    %1281 = vmatpush1.msra.mxu0 0.0
    %1282 = vmatprep.subr.mxu0 0.0
    %1283 = vmatpush1.msra.mxu0 0.0
    %1284 = vmatprep.subr.mxu0 0.0
    %1285 = vmatpush1.msra.mxu0 0.0
    %1286 = vmatprep.subr.mxu0 0.0
    %1287 = vmatpush1.msra.mxu0 0.0
    %1288 = vmatprep.subr.mxu0 0.0
    %1289 = vmatpush1.msra.mxu0 0.0
    %1290 = vmatprep.subr.mxu0 0.0
    %1291 = vmatpush1.msra.mxu0 0.0
    %1292 = vmatprep.subr.mxu0 0.0
    %1293 = vmatpush1.msra.mxu0 0.0
    %1294 = vmatprep.subr.mxu0 0.0
    %1295 = vmatpush1.msra.mxu0 0.0
    %1296 = vmatprep.subr.mxu0 0.0
    %1297 = vmatpush1.msra.mxu0 0.0
    %1298 = vmatprep.subr.mxu0 0.0
    %1299 = vmatpush1.msra.mxu0 0.0
    %1300 = vmatprep.subr.mxu0 0.0
    %1301 = vmatpush1.msra.mxu0 0.0
    %1302 = vmatprep.subr.mxu0 0.0
    %1303 = vmatpush1.msra.mxu0 0.0
    %1304 = vmatprep.subr.mxu0 0.0
    %1305 = vmatpush1.msra.mxu0 0.0
    %1306 = vmatprep.subr.mxu0 0.0
    %1307 = vmatpush1.msra.mxu0 0.0
    %1308 = vmatprep.subr.mxu0 0.0
    %1309 = vmatpush1.msra.mxu0 0.0
    %1310 = vmatprep.subr.mxu0 0.0
    %1311 = vmatpush1.msra.mxu0 0.0
    %1312 = vmatprep.subr.mxu0 0.0
    %1313 = vmatpush1.msra.mxu0 0.0
    %1314 = vmatprep.subr.mxu0 0.0
    %1315 = vmatpush1.msra.mxu0 0.0
    %1316 = vmatprep.subr.mxu0 0.0
    %1317 = vmatpush1.msra.mxu0 0.0
    %1318 = vmatprep.mubr.f32.mxu0 0.0
    %v1319 = vand.u32 %v1158, 4294901760
    %1320 = vmatmul.mubr.f32.gmra.mrb[0].mxu0 %v1319
    %v1321 = vpop.f32.mrb[0].mxu0
    %v1322 = vadd.f32 %v1236, %v1321
    %v1323 = vpop.f32.mrb[0].mxu0
    %1324 = vmatprep.mubr.f32.mxu0 0.0
    %v1325 = vand.u32 %v1161, 4294901760
    %1326 = vmatmul.mubr.f32.gmra.mrb[0].mxu0 %v1325
    %v1327 = vpop.f32.mrb[0].mxu0
    %v1328 = vadd.f32 %v1246, %v1327
    %v1329 = vpop.f32.mrb[0].mxu0
    %1330 = vdwg.mxu0
    %1331 = vmatprep.subr.mxu0 0.0
    %v1332 = vand.u32 %v1148, 4294901760
    %v1333 = vsub.f32 %v1148, %v1332
    %1334 = vmatpush1.msra.mxu0 %v1333
    %1335 = vmatprep.subr.mxu0 0.0
    %1336 = vmatpush1.msra.mxu0 0.0
    %1337 = vmatprep.subr.mxu0 0.0
    %1338 = vmatpush1.msra.mxu0 0.0
    %1339 = vmatprep.subr.mxu0 0.0
    %1340 = vmatpush1.msra.mxu0 0.0
    %1341 = vmatprep.subr.mxu0 0.0
    %1342 = vmatpush1.msra.mxu0 0.0
    %1343 = vmatprep.subr.mxu0 0.0
    %1344 = vmatpush1.msra.mxu0 0.0
    %1345 = vmatprep.subr.mxu0 0.0
    %1346 = vmatpush1.msra.mxu0 0.0
    %1347 = vmatprep.subr.mxu0 0.0
    %1348 = vmatpush1.msra.mxu0 0.0
    %1349 = vmatprep.subr.mxu0 0.0
    %1350 = vmatpush1.msra.mxu0 0.0
    %1351 = vmatprep.subr.mxu0 0.0
    %1352 = vmatpush1.msra.mxu0 0.0
    %1353 = vmatprep.subr.mxu0 0.0
    %1354 = vmatpush1.msra.mxu0 0.0
    %1355 = vmatprep.subr.mxu0 0.0
    %1356 = vmatpush1.msra.mxu0 0.0
    %1357 = vmatprep.subr.mxu0 0.0
    %1358 = vmatpush1.msra.mxu0 0.0
    %1359 = vmatprep.subr.mxu0 0.0
    %1360 = vmatpush1.msra.mxu0 0.0
    %1361 = vmatprep.subr.mxu0 0.0
    %1362 = vmatpush1.msra.mxu0 0.0
    %1363 = vmatprep.subr.mxu0 0.0
    %1364 = vmatpush1.msra.mxu0 0.0
    %1365 = vmatprep.subr.mxu0 0.0
    %1366 = vmatpush1.msra.mxu0 0.0
    %1367 = vmatprep.subr.mxu0 0.0
    %1368 = vmatpush1.msra.mxu0 0.0
    %1369 = vmatprep.subr.mxu0 0.0
    %1370 = vmatpush1.msra.mxu0 0.0
    %1371 = vmatprep.subr.mxu0 0.0
    %1372 = vmatpush1.msra.mxu0 0.0
    %1373 = vmatprep.subr.mxu0 0.0
    %1374 = vmatpush1.msra.mxu0 0.0
    %1375 = vmatprep.subr.mxu0 0.0
    %1376 = vmatpush1.msra.mxu0 0.0
    %1377 = vmatprep.subr.mxu0 0.0
    %1378 = vmatpush1.msra.mxu0 0.0
    %1379 = vmatprep.subr.mxu0 0.0
    %1380 = vmatpush1.msra.mxu0 0.0
    %1381 = vmatprep.subr.mxu0 0.0
    %1382 = vmatpush1.msra.mxu0 0.0
    %1383 = vmatprep.subr.mxu0 0.0
    %1384 = vmatpush1.msra.mxu0 0.0
    %1385 = vmatprep.subr.mxu0 0.0
    %1386 = vmatpush1.msra.mxu0 0.0
    %1387 = vmatprep.subr.mxu0 0.0
    %1388 = vmatpush1.msra.mxu0 0.0
    %1389 = vmatprep.subr.mxu0 0.0
    %1390 = vmatpush1.msra.mxu0 0.0
    %1391 = vmatprep.subr.mxu0 0.0
    %1392 = vmatpush1.msra.mxu0 0.0
    %1393 = vmatprep.subr.mxu0 0.0
    %1394 = vmatpush1.msra.mxu0 0.0
    %1395 = vmatprep.subr.mxu0 0.0
    %1396 = vmatpush1.msra.mxu0 0.0
    %1397 = vmatprep.mubr.f32.mxu0 0.0
    %v1398 = vand.u32 %v1158, 4294901760
    %v1399 = vsub.f32 %v1158, %v1398
    %1400 = vmatmul.mubr.f32.gmra.mrb[0].mxu0 %v1399
    %v1401 = vpop.f32.mrb[0].mxu0
    %v1402 = vadd.f32 %v1322, %v1401
    %v1403 = vpop.f32.mrb[0].mxu0
    %1404 = vmatprep.mubr.f32.mxu0 0.0
    %v1405 = vand.u32 %v1161, 4294901760
    %v1406 = vsub.f32 %v1161, %v1405
    %1407 = vmatmul.mubr.f32.gmra.mrb[0].mxu0 %v1406
    %v1408 = vpop.f32.mrb[0].mxu0
    %v1409 = vadd.f32 %v1328, %v1408
    %v1410 = vpop.f32.mrb[0].mxu0
    %1411 = vdwg.mxu0
    %1412 = vmatprep.subr.mxu0 0.0
    %v1413 = vand.u32 %v1148, 4294901760
    %1414 = vmatpush1.msra.mxu0 %v1413
    %1415 = vmatprep.subr.mxu0 0.0
    %1416 = vmatpush1.msra.mxu0 0.0
    %1417 = vmatprep.subr.mxu0 0.0
    %1418 = vmatpush1.msra.mxu0 0.0
    %1419 = vmatprep.subr.mxu0 0.0
    %1420 = vmatpush1.msra.mxu0 0.0
    %1421 = vmatprep.subr.mxu0 0.0
    %1422 = vmatpush1.msra.mxu0 0.0
    %1423 = vmatprep.subr.mxu0 0.0
    %1424 = vmatpush1.msra.mxu0 0.0
    %1425 = vmatprep.subr.mxu0 0.0
    %1426 = vmatpush1.msra.mxu0 0.0
    %1427 = vmatprep.subr.mxu0 0.0
    %1428 = vmatpush1.msra.mxu0 0.0
    %1429 = vmatprep.subr.mxu0 0.0
    %1430 = vmatpush1.msra.mxu0 0.0
    %1431 = vmatprep.subr.mxu0 0.0
    %1432 = vmatpush1.msra.mxu0 0.0
    %1433 = vmatprep.subr.mxu0 0.0
    %1434 = vmatpush1.msra.mxu0 0.0
    %1435 = vmatprep.subr.mxu0 0.0
    %1436 = vmatpush1.msra.mxu0 0.0
    %1437 = vmatprep.subr.mxu0 0.0
    %1438 = vmatpush1.msra.mxu0 0.0
    %1439 = vmatprep.subr.mxu0 0.0
    %1440 = vmatpush1.msra.mxu0 0.0
    %1441 = vmatprep.subr.mxu0 0.0
    %1442 = vmatpush1.msra.mxu0 0.0
    %1443 = vmatprep.subr.mxu0 0.0
    %1444 = vmatpush1.msra.mxu0 0.0
    %1445 = vmatprep.subr.mxu0 0.0
    %1446 = vmatpush1.msra.mxu0 0.0
    %1447 = vmatprep.subr.mxu0 0.0
    %1448 = vmatpush1.msra.mxu0 0.0
    %1449 = vmatprep.subr.mxu0 0.0
    %1450 = vmatpush1.msra.mxu0 0.0
    %1451 = vmatprep.subr.mxu0 0.0
    %1452 = vmatpush1.msra.mxu0 0.0
    %1453 = vmatprep.subr.mxu0 0.0
    %1454 = vmatpush1.msra.mxu0 0.0
    %1455 = vmatprep.subr.mxu0 0.0
    %1456 = vmatpush1.msra.mxu0 0.0
    %1457 = vmatprep.subr.mxu0 0.0
    %1458 = vmatpush1.msra.mxu0 0.0
    %1459 = vmatprep.subr.mxu0 0.0
    %1460 = vmatpush1.msra.mxu0 0.0
    %1461 = vmatprep.subr.mxu0 0.0
    %1462 = vmatpush1.msra.mxu0 0.0
    %1463 = vmatprep.subr.mxu0 0.0
    %1464 = vmatpush1.msra.mxu0 0.0
    %1465 = vmatprep.subr.mxu0 0.0
    %1466 = vmatpush1.msra.mxu0 0.0
    %1467 = vmatprep.subr.mxu0 0.0
    %1468 = vmatpush1.msra.mxu0 0.0
    %1469 = vmatprep.subr.mxu0 0.0
    %1470 = vmatpush1.msra.mxu0 0.0
    %1471 = vmatprep.subr.mxu0 0.0
    %1472 = vmatpush1.msra.mxu0 0.0
    %1473 = vmatprep.subr.mxu0 0.0
    %1474 = vmatpush1.msra.mxu0 0.0
    %1475 = vmatprep.subr.mxu0 0.0
    %1476 = vmatpush1.msra.mxu0 0.0
    %1477 = vmatprep.mubr.f32.mxu0 0.0
    %v1478 = vand.u32 %v1158, 4294901760
    %v1479 = vsub.f32 %v1158, %v1478
    %v1480 = vand.u32 %v1479, 4294901760
    %1481 = vmatmul.mubr.f32.gmra.mrb[0].mxu0 %v1480
    %v1482 = vpop.f32.mrb[0].mxu0
    %v1483 = vadd.f32 %v1402, %v1482
    %v1484 = vpop.f32.mrb[0].mxu0
    %1485 = vmatprep.mubr.f32.mxu0 0.0
    %v1486 = vand.u32 %v1161, 4294901760
    %v1487 = vsub.f32 %v1161, %v1486
    %v1488 = vand.u32 %v1487, 4294901760
    %1489 = vmatmul.mubr.f32.gmra.mrb[0].mxu0 %v1488
    %v1490 = vpop.f32.mrb[0].mxu0
    %v1491 = vadd.f32 %v1409, %v1490
    %v1492 = vpop.f32.mrb[0].mxu0
    %1493 = vdwg.mxu0
    %1494 = vmatprep.subr.mxu0 0.0
    %v1495 = vand.u32 %v1148, 4294901760
    %v1496 = vsub.f32 %v1148, %v1495
    %v1497 = vand.u32 %v1496, 4294901760
    %1498 = vmatpush1.msra.mxu0 %v1497
    %1499 = vmatprep.subr.mxu0 0.0
    %1500 = vmatpush1.msra.mxu0 0.0
    %1501 = vmatprep.subr.mxu0 0.0
    %1502 = vmatpush1.msra.mxu0 0.0
    %1503 = vmatprep.subr.mxu0 0.0
    %1504 = vmatpush1.msra.mxu0 0.0
    %1505 = vmatprep.subr.mxu0 0.0
    %1506 = vmatpush1.msra.mxu0 0.0
    %1507 = vmatprep.subr.mxu0 0.0
    %1508 = vmatpush1.msra.mxu0 0.0
    %1509 = vmatprep.subr.mxu0 0.0
    %1510 = vmatpush1.msra.mxu0 0.0
    %1511 = vmatprep.subr.mxu0 0.0
    %1512 = vmatpush1.msra.mxu0 0.0
    %1513 = vmatprep.subr.mxu0 0.0
    %1514 = vmatpush1.msra.mxu0 0.0
    %1515 = vmatprep.subr.mxu0 0.0
    %1516 = vmatpush1.msra.mxu0 0.0
    %1517 = vmatprep.subr.mxu0 0.0
    %1518 = vmatpush1.msra.mxu0 0.0
    %1519 = vmatprep.subr.mxu0 0.0
    %1520 = vmatpush1.msra.mxu0 0.0
    %1521 = vmatprep.subr.mxu0 0.0
    %1522 = vmatpush1.msra.mxu0 0.0
    %1523 = vmatprep.subr.mxu0 0.0
    %1524 = vmatpush1.msra.mxu0 0.0
    %1525 = vmatprep.subr.mxu0 0.0
    %1526 = vmatpush1.msra.mxu0 0.0
    %1527 = vmatprep.subr.mxu0 0.0
    %1528 = vmatpush1.msra.mxu0 0.0
    %1529 = vmatprep.subr.mxu0 0.0
    %1530 = vmatpush1.msra.mxu0 0.0
    %1531 = vmatprep.subr.mxu0 0.0
    %1532 = vmatpush1.msra.mxu0 0.0
    %1533 = vmatprep.subr.mxu0 0.0
    %1534 = vmatpush1.msra.mxu0 0.0
    %1535 = vmatprep.subr.mxu0 0.0
    %1536 = vmatpush1.msra.mxu0 0.0
    %1537 = vmatprep.subr.mxu0 0.0
    %1538 = vmatpush1.msra.mxu0 0.0
    %1539 = vmatprep.subr.mxu0 0.0
    %1540 = vmatpush1.msra.mxu0 0.0
    %1541 = vmatprep.subr.mxu0 0.0
    %1542 = vmatpush1.msra.mxu0 0.0
    %1543 = vmatprep.subr.mxu0 0.0
    %1544 = vmatpush1.msra.mxu0 0.0
    %1545 = vmatprep.subr.mxu0 0.0
    %1546 = vmatpush1.msra.mxu0 0.0
    %1547 = vmatprep.subr.mxu0 0.0
    %1548 = vmatpush1.msra.mxu0 0.0
    %1549 = vmatprep.subr.mxu0 0.0
    %1550 = vmatpush1.msra.mxu0 0.0
    %1551 = vmatprep.subr.mxu0 0.0
    %1552 = vmatpush1.msra.mxu0 0.0
    %1553 = vmatprep.subr.mxu0 0.0
    %1554 = vmatpush1.msra.mxu0 0.0
    %1555 = vmatprep.subr.mxu0 0.0
    %1556 = vmatpush1.msra.mxu0 0.0
    %1557 = vmatprep.subr.mxu0 0.0
    %1558 = vmatpush1.msra.mxu0 0.0
    %1559 = vmatprep.subr.mxu0 0.0
    %1560 = vmatpush1.msra.mxu0 0.0
    %1561 = vmatprep.mubr.f32.mxu0 0.0
    %v1562 = vand.u32 %v1158, 4294901760
    %1563 = vmatmul.mubr.f32.gmra.mrb[0].mxu0 %v1562
    %v1564 = vpop.f32.mrb[0].mxu0
    %v1565 = vadd.f32 %v1483, %v1564
    %v1566 = vpop.f32.mrb[0].mxu0
    %1567 = vmatprep.mubr.f32.mxu0 0.0
    %v1568 = vand.u32 %v1161, 4294901760
    %1569 = vmatmul.mubr.f32.gmra.mrb[0].mxu0 %v1568
    %v1570 = vpop.f32.mrb[0].mxu0
    %v1571 = vadd.f32 %v1491, %v1570
    %v1572 = vpop.f32.mrb[0].mxu0
    %1573 = vdwg.mxu0
    %1574 = vmatprep.subr.mxu0 0.0
    %v1575 = vand.u32 %v1148, 4294901760
    %1576 = vmatpush1.msra.mxu0 %v1575
    %1577 = vmatprep.subr.mxu0 0.0
    %1578 = vmatpush1.msra.mxu0 0.0
    %1579 = vmatprep.subr.mxu0 0.0
    %1580 = vmatpush1.msra.mxu0 0.0
    %1581 = vmatprep.subr.mxu0 0.0
    %1582 = vmatpush1.msra.mxu0 0.0
    %1583 = vmatprep.subr.mxu0 0.0
    %1584 = vmatpush1.msra.mxu0 0.0
    %1585 = vmatprep.subr.mxu0 0.0
    %1586 = vmatpush1.msra.mxu0 0.0
    %1587 = vmatprep.subr.mxu0 0.0
    %1588 = vmatpush1.msra.mxu0 0.0
    %1589 = vmatprep.subr.mxu0 0.0
    %1590 = vmatpush1.msra.mxu0 0.0
    %1591 = vmatprep.subr.mxu0 0.0
    %1592 = vmatpush1.msra.mxu0 0.0
    %1593 = vmatprep.subr.mxu0 0.0
    %1594 = vmatpush1.msra.mxu0 0.0
    %1595 = vmatprep.subr.mxu0 0.0
    %1596 = vmatpush1.msra.mxu0 0.0
    %1597 = vmatprep.subr.mxu0 0.0
    %1598 = vmatpush1.msra.mxu0 0.0
    %1599 = vmatprep.subr.mxu0 0.0
    %1600 = vmatpush1.msra.mxu0 0.0
    %1601 = vmatprep.subr.mxu0 0.0
    %1602 = vmatpush1.msra.mxu0 0.0
    %1603 = vmatprep.subr.mxu0 0.0
    %1604 = vmatpush1.msra.mxu0 0.0
    %1605 = vmatprep.subr.mxu0 0.0
    %1606 = vmatpush1.msra.mxu0 0.0
    %1607 = vmatprep.subr.mxu0 0.0
    %1608 = vmatpush1.msra.mxu0 0.0
    %1609 = vmatprep.subr.mxu0 0.0
    %1610 = vmatpush1.msra.mxu0 0.0
    %1611 = vmatprep.subr.mxu0 0.0
    %1612 = vmatpush1.msra.mxu0 0.0
    %1613 = vmatprep.subr.mxu0 0.0
    %1614 = vmatpush1.msra.mxu0 0.0
    %1615 = vmatprep.subr.mxu0 0.0
    %1616 = vmatpush1.msra.mxu0 0.0
    %1617 = vmatprep.subr.mxu0 0.0
    %1618 = vmatpush1.msra.mxu0 0.0
    %1619 = vmatprep.subr.mxu0 0.0
    %1620 = vmatpush1.msra.mxu0 0.0
    %1621 = vmatprep.subr.mxu0 0.0
    %1622 = vmatpush1.msra.mxu0 0.0
    %1623 = vmatprep.subr.mxu0 0.0
    %1624 = vmatpush1.msra.mxu0 0.0
    %1625 = vmatprep.subr.mxu0 0.0
    %1626 = vmatpush1.msra.mxu0 0.0
    %1627 = vmatprep.subr.mxu0 0.0
    %1628 = vmatpush1.msra.mxu0 0.0
    %1629 = vmatprep.subr.mxu0 0.0
    %1630 = vmatpush1.msra.mxu0 0.0
    %1631 = vmatprep.subr.mxu0 0.0
    %1632 = vmatpush1.msra.mxu0 0.0
    %1633 = vmatprep.subr.mxu0 0.0
    %1634 = vmatpush1.msra.mxu0 0.0
    %1635 = vmatprep.subr.mxu0 0.0
    %1636 = vmatpush1.msra.mxu0 0.0
    %1637 = vmatprep.subr.mxu0 0.0
    %1638 = vmatpush1.msra.mxu0 0.0
    %1639 = vmatprep.mubr.f32.mxu0 0.0
    %v1640 = vand.u32 %v1158, 4294901760
    %1641 = vmatmul.mubr.f32.gmra.mrb[0].mxu0 %v1640
    %v1642 = vpop.f32.mrb[0].mxu0
    %v1643 = vadd.f32 %v1565, %v1642
    %v1644 = vpop.f32.mrb[0].mxu0
    %1645 = vmatprep.mubr.f32.mxu0 0.0
    %v1646 = vand.u32 %v1161, 4294901760
    %1647 = vmatmul.mubr.f32.gmra.mrb[0].mxu0 %v1646
    %v1648 = vpop.f32.mrb[0].mxu0
    %v1649 = vadd.f32 %v1571, %v1648
    %v1650 = vpop.f32.mrb[0].mxu0
    %1651 = vdwg.mxu0
    %1652 = vst [vmem:[#allocation2] sm:$0xff] %v1643
    %1653 = vst [vmem:[#allocation2 + $0x8] sm:$0xff] %v1649
    // Predicated region
    $region22: #{feed_forward_quantum.1} parent=1 // pred_check
      _
    $region23: #{feed_forward_quantum.1} parent=1 // pred_check_branch
      %1655 = sbr.rel (0) target = $region25
    $region24: #{feed_forward_quantum.1} parent=1 // pred_region
      %s1657 = ssub.s32 256, 256
      %1658 = vsyncadd [#allocation3], %s1657
      %s1659 = sshll.u32 [#allocation2], 4
      %s1660 = int_to_ptr.vmem [resolvable:$true] %s1659
      %1665 = dma.vmem_to_hbm [thread:$0]  %s1660, 256, %s5, [#allocation3], 128, 128, 8
    $region25: #{feed_forward_quantum.1} parent=1 // pred_fallthru
      _
    // Predicated region
    $region26: #{feed_forward_quantum.1} parent=1 // pred_check
      _
    $region27: #{feed_forward_quantum.1} parent=1 // pred_check_branch
      %1667 = sbr.rel (0) target = $region29
    $region28: #{feed_forward_quantum.1} parent=1 // pred_region
      %1668 = dma.done [#allocation3], 256
    $region29: #{feed_forward_quantum.1} parent=1 // pred_fallthru
      _
    %1669 = vsyncpa [#allocation3], 1

</llo_original>
